<compile_context>
chip_gen: v7x
topology: tpu7x:2x2x1
jax: 0.10.0
libtpu: 0.0.40
codegen_flags: <defaults>
</compile_context>

<pallas_src>
import functools

import jax
import jax.numpy as jnp
from jax import lax
from jax.experimental import pallas as pl
from jax.experimental.pallas import tpu as pltpu

BN_EPS = 1e-5
NSPLIT = 2          # leading "parallel" grid axis in pass 1 (2 TCs on v7x;
                    # runs sequentially and harmlessly on 1-TC v5e/v6e)
_MIN_TILE_M = 256   # multiple of the bf16 sublane tile (16) and MXU-friendly
_MAX_TILE_M = 2048


def _round_up(x, m):
    return (x + m - 1) // m * m


def _vmem_limit_bytes():
    """Generation-aware scoped-VMEM limit (v7x: 64 MiB physical, v5e/v6e: 128 MiB)."""
    try:
        cap = int(pltpu.get_tpu_info().vmem_capacity_bytes)
    except Exception:
        cap = 64 << 20          # conservative fallback (covers v7x)
    return min(100 << 20, (cap * 3) // 4)


VMEM_LIMIT = _vmem_limit_bytes()


def _pick_tile_m(m, k, c_out):
    """Largest M tile that fits the VMEM budget without over-padding small M."""
    # Heaviest per-row VMEM across the passes: double-buffered bf16 patches
    # plus double-buffered f32 conv/out tiles; weights/affine are resident.
    per_row = 4 * k + 16 * c_out
    fixed = 2 * k * c_out + 32 * c_out
    budget = VMEM_LIMIT // 2                       # headroom for Mosaic scratch
    tile = (budget - fixed) // max(per_row, 1)
    tile = max(_MIN_TILE_M, min(tile, _MAX_TILE_M))
    per_core = -(-m // NSPLIT)                     # ceil(m / NSPLIT)
    tile = min(tile, _round_up(per_core, _MIN_TILE_M))
    return max(_MIN_TILE_M, (tile // _MIN_TILE_M) * _MIN_TILE_M)


# ----------------------------- kernels --------------------------------------


def _silu(y):
    # sigmoid via tanh keeps the transcendental on the EUP slot, no VALU divide:
    # sigmoid(y) = 0.5 * (1 + tanh(y / 2))
    return y * (0.5 * jnp.tanh(0.5 * y) + 0.5)


def _stats_conv_kernel(patches_ref, w_ref, stats_ref, conv_ref):
    """Pass 1 (round-trip variant): conv tile on the MXU; accumulate per-channel
    sum / sum-of-squares into the resident stats block; write the f32 conv tile
    to HBM so pass 2 needs neither the patches stream nor a second matmul."""
    i = pl.program_id(1)

    @pl.when(i == 0)
    def _():
        stats_ref[...] = jnp.zeros_like(stats_ref)

    conv = jnp.dot(patches_ref[...], w_ref[...],
                   preferred_element_type=jnp.float32)       # [tile_m, c_out] f32
    stats_ref[0:1, :] += jnp.sum(conv, axis=0, keepdims=True)
    stats_ref[1:2, :] += jnp.sum(conv * conv, axis=0, keepdims=True)
    conv_ref[...] = conv


def _stats_kernel(patches_ref, w_ref, stats_ref):
    """Pass 1 (recompute variant): statistics only."""
    i = pl.program_id(1)

    @pl.when(i == 0)
    def _():
        stats_ref[...] = jnp.zeros_like(stats_ref)

    conv = jnp.dot(patches_ref[...], w_ref[...],
                   preferred_element_type=jnp.float32)
    stats_ref[0:1, :] += jnp.sum(conv, axis=0, keepdims=True)
    stats_ref[1:2, :] += jnp.sum(conv * conv, axis=0, keepdims=True)


def _apply_from_conv_kernel(conv_ref, affine_ref, o_ref):
    """Pass 2 (round-trip variant): folded BN (y = conv*scale + shift) -> SiLU."""
    y = conv_ref[...] * affine_ref[0:1, :] + affine_ref[1:2, :]
    o_ref[...] = _silu(y).astype(o_ref.dtype)


def _apply_recompute_kernel(patches_ref, w_ref, affine_ref, o_ref):
    """Pass 2 (recompute variant): conv tile -> folded BN -> SiLU."""
    conv = jnp.dot(patches_ref[...], w_ref[...],
                   preferred_element_type=jnp.float32)
    y = conv * affine_ref[0:1, :] + affine_ref[1:2, :]
    o_ref[...] = _silu(y).astype(o_ref.dtype)


# ------------------------------ wrapper --------------------------------------


def _im2col(x, kernel_size, stride, padding):
    # x: [N, C, H, W] -> patches: [N*H_out*W_out, C*KH*KW], K order = (c, kh, kw)
    n, c, h, w = x.shape
    kh = kw = kernel_size
    xp = jnp.pad(x, ((0, 0), (0, 0), (padding, padding), (padding, padding)))
    h_out = (h + 2 * padding - kh) // stride + 1
    w_out = (w + 2 * padding - kw) // stride + 1
    cols = []
    for i in range(kh):
        for j in range(kw):
            sl = xp[:, :, i:i + (h_out - 1) * stride + 1:stride,
                          j:j + (w_out - 1) * stride + 1:stride]
            cols.append(sl)  # [N, C, H_out, W_out]
    pat = jnp.stack(cols, axis=2)                      # [N, C, KH*KW, H_out, W_out]
    pat = jnp.transpose(pat, (0, 3, 4, 1, 2))          # [N, H_out, W_out, C, KH*KW]
    pat = pat.reshape(n * h_out * w_out, c * kh * kw)  # [M, K]
    return pat, h_out, w_out


@functools.partial(jax.jit, static_argnames=("kernel_size", "stride", "padding"))
def cnn_block(x, weight, bias, gamma, beta, *, kernel_size, stride, padding):
    """x: [N, C_in, H, W] (NCHW). weight: [C_out, C_in, KH, KW]. groups=1 only."""
    del bias  # exactly cancelled by training-mode BN mean subtraction (training mode only)
    n, c_in, h, w = x.shape
    c_out = weight.shape[0]

    # TODO(synk): im2col is still materialized in HBM (KH*KW x input traffic);
    # an in-kernel im2col (halo'd NHWC input tiles + KH*KW shifted MXU panels)
    # would remove it.  It is now built directly in bf16 and left unpadded
    # along K, so it exists in HBM exactly once.
    patches, h_out, w_out = _im2col(x.astype(jnp.bfloat16),
                                    kernel_size, stride, padding)
    m, k = patches.shape

    tile_m = _pick_tile_m(m, k, c_out)
    m_pad = _round_up(m, NSPLIT * tile_m)
    tiles_total = m_pad // tile_m
    tiles_per_core = tiles_total // NSPLIT
    if m_pad != m:
        patches = jnp.pad(patches, ((0, m_pad - m), (0, 0)))   # zero rows -> zero stats

    w2d = weight.reshape(c_out, c_in * kernel_size * kernel_size).T  # [K, C_out]
    w2d = w2d.astype(jnp.bfloat16)

    # Round-trip the f32 conv through HBM when that is cheaper than re-reading
    # the bf16 patches stream (and redoing the matmul) in pass 2.
    roundtrip = 2 * k > 8 * c_out

    # ---- pass 1: batch statistics (+ optional conv round-trip) over M -------
    patch_spec1 = pl.BlockSpec((tile_m, k),
                               lambda c, i: (c * tiles_per_core + i, 0))
    w_spec1 = pl.BlockSpec((k, c_out), lambda c, i: (0, 0),
                           pipeline_mode=pl.Buffered(1))     # resident, single buffer
    stats_spec = pl.BlockSpec((None, 8, c_out), lambda c, i: (c, 0, 0))

    cparams1 = pltpu.CompilerParams(
        dimension_semantics=("parallel", "arbitrary"),
        vmem_limit_bytes=VMEM_LIMIT)
    flops1 = 2 * m_pad * k * c_out
    bytes1 = m_pad * k * 2 + k * c_out * 2 + NSPLIT * 8 * c_out * 4
    if roundtrip:
        bytes1 += m_pad * c_out * 4

    if roundtrip:
        stats_part, conv_hbm = pl.pallas_call(
            _stats_conv_kernel,
            out_shape=(jax.ShapeDtypeStruct((NSPLIT, 8, c_out), jnp.float32),
                       jax.ShapeDtypeStruct((m_pad, c_out), jnp.float32)),
            grid=(NSPLIT, tiles_per_core),
            in_specs=[patch_spec1, w_spec1],
            out_specs=(stats_spec,
                       pl.BlockSpec((tile_m, c_out),
                                    lambda c, i: (c * tiles_per_core + i, 0))),
            compiler_params=cparams1,
            cost_estimate=pl.CostEstimate(flops=flops1, transcendentals=0,
                                          bytes_accessed=bytes1),
        )(patches, w2d)
    else:
        conv_hbm = None
        stats_part = pl.pallas_call(
            _stats_kernel,
            out_shape=jax.ShapeDtypeStruct((NSPLIT, 8, c_out), jnp.float32),
            grid=(NSPLIT, tiles_per_core),
            in_specs=[patch_spec1, w_spec1],
            out_specs=stats_spec,
            compiler_params=cparams1,
            cost_estimate=pl.CostEstimate(flops=flops1, transcendentals=0,
                                          bytes_accessed=bytes1),
        )(patches, w2d)

    # ---- fold training-mode BN into a per-channel affine (tiny, plain JAX) --
    stats = jnp.sum(stats_part, axis=0)            # (8, c_out); padded rows contribute 0
    s1, s2 = stats[0], stats[1]
    mean = s1 / m
    # TODO(synk): E[x^2]-E[x]^2 in f32 can cancel for huge M with |mean| >> std;
    # a shifted / Kahan-style accumulation would be safer there.
    var = jnp.maximum(s2 / m - mean * mean, 0.0)
    inv_std = lax.rsqrt(var + BN_EPS)
    scale = gamma.astype(jnp.float32) * inv_std
    shift = beta.astype(jnp.float32) - mean * scale
    affine = jnp.zeros((8, c_out), jnp.float32)
    affine = affine.at[0].set(scale)
    affine = affine.at[1].set(shift)

    # ---- pass 2: folded BN + SiLU, parallel over M ---------------------------
    out_shape2 = jax.ShapeDtypeStruct((m_pad, c_out), jnp.float32)
    out_spec2 = pl.BlockSpec((tile_m, c_out), lambda i: (i, 0))
    affine_spec2 = pl.BlockSpec((8, c_out), lambda i: (0, 0),
                                pipeline_mode=pl.Buffered(1))
    cparams2 = pltpu.CompilerParams(dimension_semantics=("parallel",),
                                    vmem_limit_bytes=VMEM_LIMIT)
    trans2 = m_pad * c_out

    if roundtrip:
        out2d = pl.pallas_call(
            _apply_from_conv_kernel,
            out_shape=out_shape2,
            grid=(tiles_total,),
            in_specs=[pl.BlockSpec((tile_m, c_out), lambda i: (i, 0)),
                      affine_spec2],
            out_specs=out_spec2,
            compiler_params=cparams2,
            cost_estimate=pl.CostEstimate(
                flops=4 * m_pad * c_out, transcendentals=trans2,
                bytes_accessed=2 * m_pad * c_out * 4 + 8 * c_out * 4),
        )(conv_hbm, affine)
    else:
        out2d = pl.pallas_call(
            _apply_recompute_kernel,
            out_shape=out_shape2,
            grid=(tiles_total,),
            in_specs=[pl.BlockSpec((tile_m, k), lambda i: (i, 0)),
                      pl.BlockSpec((k, c_out), lambda i: (0, 0),
                                   pipeline_mode=pl.Buffered(1)),
                      affine_spec2],
            out_specs=out_spec2,
            compiler_params=cparams2,
            cost_estimate=pl.CostEstimate(
                flops=2 * m_pad * k * c_out, transcendentals=trans2,
                bytes_accessed=m_pad * k * 2 + k * c_out * 2
                               + 8 * c_out * 4 + m_pad * c_out * 4),
        )(patches, w2d, affine)

    if m_pad != m:
        out2d = out2d[:m]
    out = out2d.reshape(n, h_out, w_out, c_out)
    # TODO(synk): if the consumer can take NHWC, return `out` directly and skip
    # this full-output transpose.
    return jnp.transpose(out, (0, 3, 1, 2))


# ------------------------------ reference ------------------------------------


def _reference(x, weight, bias, gamma, beta, *, stride, padding):
    # Pure-JAX reference of the same forward pass.  Inputs are quantized to
    # bf16 exactly like the kernel's MXU operands so both paths see identical
    # data; everything else is f32.
    xq = x.astype(jnp.bfloat16).astype(jnp.float32)
    wq = weight.astype(jnp.bfloat16).astype(jnp.float32)
    conv = lax.conv_general_dilated(
        xq, wq, window_strides=(stride, stride),
        padding=[(padding, padding), (padding, padding)],
        dimension_numbers=("NCHW", "OIHW", "NCHW"),
        precision=lax.Precision.HIGHEST,
    ) + bias.reshape(1, -1, 1, 1)
    mean = jnp.mean(conv, axis=(0, 2, 3), keepdims=True)
    var = jnp.mean((conv - mean) ** 2, axis=(0, 2, 3), keepdims=True)
    y = (conv - mean) * lax.rsqrt(var + BN_EPS)
    y = y * gamma.reshape(1, -1, 1, 1) + beta.reshape(1, -1, 1, 1)
    return y * jax.nn.sigmoid(y)


if __name__ == "__main__":
    # CNNBlock(in_channel=4, out_channel=8, kernel_size=3, stride=1, padding=1)
    N, C_IN, H, W = 2, 4, 16, 16
    C_OUT, KSIZE, STRIDE, PAD = 8, 3, 1, 1

    key = jax.random.PRNGKey(0)
    kx, kwt, kb, kg, kbe = jax.random.split(key, 5)

    x = jax.random.normal(kx, (N, C_IN, H, W), dtype=jnp.float32)
    fan_in = C_IN * KSIZE * KSIZE
    weight = jax.random.uniform(kwt, (C_OUT, C_IN, KSIZE, KSIZE),
                                minval=-1.0, maxval=1.0) / jnp.sqrt(fan_in)
    bias = jax.random.uniform(kb, (C_OUT,), minval=-1.0, maxval=1.0) / jnp.sqrt(fan_in)
    gamma = 1.0 + 0.1 * jax.random.normal(kg, (C_OUT,))
    beta = 0.1 * jax.random.normal(kbe, (C_OUT,))

    out = cnn_block(x, weight, bias, gamma, beta,
                    kernel_size=KSIZE, stride=STRIDE, padding=PAD)
    out = jax.block_until_ready(out)

    ref = _reference(x, weight, bias, gamma, beta, stride=STRIDE, padding=PAD)
    assert out.shape == (N, C_OUT, H, W)
    # bf16-fed MXU with f32 accumulation (reference quantizes inputs the same
    # way), so remaining differences are f32 summation-order only.
    assert jnp.allclose(out, ref, atol=1e-3, rtol=1e-3), "mismatch vs reference"

    print("KERNEL_OK")
</pallas_src>

<mosaic_0001>
module attributes {stable_mosaic.version = 11 : i64} {
  func.func @_stats_conv_kernel(%arg0: i32, %arg1: i32, %arg2: memref<256x36xbf16, #tpu.memory_space<vmem>>, %arg3: memref<36x8xbf16, #tpu.memory_space<vmem>>, %arg4: memref<1x8x8xf32, #tpu.memory_space<vmem>>, %arg5: memref<256x8xf32, #tpu.memory_space<vmem>>) attributes {dimension_semantics = [#tpu.dimension_semantics<parallel>, #tpu.dimension_semantics<arbitrary>], iteration_bounds = array<i64: 2, 1>, scalar_prefetch = 0 : i64, scratch_operands = 0 : i64, tpu.core_type = #tpu.core_type<tc>, window_params = [{transform_indices = @transform_0, window_bounds = array<i64: 256, 36>}, {pipeline_mode = #tpu.pipeline_mode<synchronous>, transform_indices = @transform_1, window_bounds = array<i64: 36, 8>}, {transform_indices = @transform_2, window_bounds = array<i64: 1, 8, 8>}, {transform_indices = @transform_3, window_bounds = array<i64: 256, 8>}]} {
    %c0_i32 = arith.constant 0 : i32
    %0 = arith.cmpi eq, %arg1, %c0_i32 : i32
    %1 = arith.extui %0 : i1 to i32
    %c0_i32_0 = arith.constant 0 : i32
    %2 = arith.cmpi ne, %1, %c0_i32_0 : i32
    scf.if %2 {
      %cst_19 = arith.constant 0.000000e+00 : f32
      %24 = vector.broadcast %cst_19 : f32 to vector<8x8xf32>
      %c0_20 = arith.constant 0 : index
      %c0_21 = arith.constant 0 : index
      %c0_22 = arith.constant 0 : index
      %25 = vector.load %arg4[%c0_20, %c0_21, %c0_22] : memref<1x8x8xf32, #tpu.memory_space<vmem>>, vector<1x8x8xf32>
      %26 = vector.shape_cast %25 : vector<1x8x8xf32> to vector<8x8xf32>
      %27 = vector.shape_cast %24 : vector<8x8xf32> to vector<1x8x8xf32>
      tpu.vector_store %arg4[%c0_20, %c0_21, %c0_22], %27 {strides = array<i32>} : memref<1x8x8xf32, #tpu.memory_space<vmem>>, vector<1x8x8xf32>,
    } else {
    }
    %c0 = arith.constant 0 : index
    %c0_1 = arith.constant 0 : index
    %3 = vector.load %arg2[%c0, %c0_1] : memref<256x36xbf16, #tpu.memory_space<vmem>>, vector<256x36xbf16>
    %c0_2 = arith.constant 0 : index
    %c0_3 = arith.constant 0 : index
    %4 = vector.load %arg3[%c0_2, %c0_3] : memref<36x8xbf16, #tpu.memory_space<vmem>>, vector<36x8xbf16>
    %cst = arith.constant dense<0.000000e+00> : vector<256x8xf32>
    %5 = tpu.matmul %3, %4, %cst {dimension_numbers = #tpu.dot_dimension_numbers<[1], [0], [0], [1], [0, 0, 1, 1], [], []>} : vector<256x36xbf16>, vector<36x8xbf16>, vector<256x8xf32> -> vector<256x8xf32>
    %c0_4 = arith.constant 0 : index
    %c0_5 = arith.constant 0 : index
    %c0_6 = arith.constant 0 : index
    %6 = vector.load %arg4[%c0_4, %c0_5, %c0_6] : memref<1x8x8xf32, #tpu.memory_space<vmem>>, vector<1x1x8xf32>
    %7 = vector.shape_cast %6 : vector<1x1x8xf32> to vector<1x8xf32>
    %cst_7 = arith.constant dense<0.000000e+00> : vector<8xf32>
    %8 = vector.multi_reduction <add>, %5, %cst_7 [0] : vector<256x8xf32> to vector<8xf32>
    %9 = vector.shape_cast %8 : vector<8xf32> to vector<1x8xf32>
    %10 = arith.addf %7, %9 : vector<1x8xf32>
    %c0_8 = arith.constant 0 : index
    %c0_9 = arith.constant 0 : index
    %c0_10 = arith.constant 0 : index
    %11 = vector.load %arg4[%c0_8, %c0_9, %c0_10] : memref<1x8x8xf32, #tpu.memory_space<vmem>>, vector<1x1x8xf32>
    %12 = vector.shape_cast %11 : vector<1x1x8xf32> to vector<1x8xf32>
    %13 = vector.shape_cast %10 : vector<1x8xf32> to vector<1x1x8xf32>
    tpu.vector_store %arg4[%c0_8, %c0_9, %c0_10], %13 {strides = array<i32>} : memref<1x8x8xf32, #tpu.memory_space<vmem>>, vector<1x1x8xf32>,
    %c0_11 = arith.constant 0 : index
    %c1 = arith.constant 1 : index
    %c0_12 = arith.constant 0 : index
    %14 = vector.load %arg4[%c0_11, %c1, %c0_12] : memref<1x8x8xf32, #tpu.memory_space<vmem>>, vector<1x1x8xf32>
    %15 = vector.shape_cast %14 : vector<1x1x8xf32> to vector<1x8xf32>
    %16 = arith.mulf %5, %5 : vector<256x8xf32>
    %cst_13 = arith.constant dense<0.000000e+00> : vector<8xf32>
    %17 = vector.multi_reduction <add>, %16, %cst_13 [0] : vector<256x8xf32> to vector<8xf32>
    %18 = vector.shape_cast %17 : vector<8xf32> to vector<1x8xf32>
    %19 = arith.addf %15, %18 : vector<1x8xf32>
    %c0_14 = arith.constant 0 : index
    %c1_15 = arith.constant 1 : index
    %c0_16 = arith.constant 0 : index
    %20 = vector.load %arg4[%c0_14, %c1_15, %c0_16] : memref<1x8x8xf32, #tpu.memory_space<vmem>>, vector<1x1x8xf32>
    %21 = vector.shape_cast %20 : vector<1x1x8xf32> to vector<1x8xf32>
    %22 = vector.shape_cast %19 : vector<1x8xf32> to vector<1x1x8xf32>
    tpu.vector_store %arg4[%c0_14, %c1_15, %c0_16], %22 {strides = array<i32>} : memref<1x8x8xf32, #tpu.memory_space<vmem>>, vector<1x1x8xf32>,
    %c0_17 = arith.constant 0 : index
    %c0_18 = arith.constant 0 : index
    %23 = vector.load %arg5[%c0_17, %c0_18] : memref<256x8xf32, #tpu.memory_space<vmem>>, vector<256x8xf32>
    tpu.vector_store %arg5[%c0_17, %c0_18], %5 {strides = array<i32>} : memref<256x8xf32, #tpu.memory_space<vmem>>, vector<256x8xf32>,
    return
  }
  func.func @transform_0(%arg0: i32, %arg1: i32) -> (i32, i32) {
    %c1_i32 = arith.constant 1 : i32
    %0 = arith.muli %arg0, %c1_i32 : i32
    %1 = arith.addi %0, %arg1 : i32
    %c0_i32 = arith.constant 0 : i32
    %c0_i32_0 = arith.constant 0 : i32
    return %1, %c0_i32 : i32, i32
  }
  func.func @transform_1(%arg0: i32, %arg1: i32) -> (i32, i32) {
    %c0_i32 = arith.constant 0 : i32
    %c0_i32_0 = arith.constant 0 : i32
    %c0_i32_1 = arith.constant 0 : i32
    return %c0_i32, %c0_i32_0 : i32, i32
  }
  func.func @transform_2(%arg0: i32, %arg1: i32) -> (i32, i32, i32) {
    %c0_i32 = arith.constant 0 : i32
    %c0_i32_0 = arith.constant 0 : i32
    %c0_i32_1 = arith.constant 0 : i32
    return %arg0, %c0_i32, %c0_i32_0 : i32, i32, i32
  }
  func.func @transform_3(%arg0: i32, %arg1: i32) -> (i32, i32) {
    %c1_i32 = arith.constant 1 : i32
    %0 = arith.muli %arg0, %c1_i32 : i32
    %1 = arith.addi %0, %arg1 : i32
    %c0_i32 = arith.constant 0 : i32
    %c0_i32_0 = arith.constant 0 : i32
    return %1, %c0_i32 : i32, i32
  }
}

module attributes {stable_mosaic.version = 11 : i64} {
  func.func @_apply_from_conv_kernel(%arg0: i32, %arg1: memref<256x8xf32, #tpu.memory_space<vmem>>, %arg2: memref<8x8xf32, #tpu.memory_space<vmem>>, %arg3: memref<256x8xf32, #tpu.memory_space<vmem>>) attributes {dimension_semantics = [#tpu.dimension_semantics<parallel>], iteration_bounds = array<i64: 2>, scalar_prefetch = 0 : i64, scratch_operands = 0 : i64, tpu.core_type = #tpu.core_type<tc>, window_params = [{transform_indices = @transform_0, window_bounds = array<i64: 256, 8>}, {pipeline_mode = #tpu.pipeline_mode<synchronous>, transform_indices = @transform_1, window_bounds = array<i64: 8, 8>}, {transform_indices = @transform_2, window_bounds = array<i64: 256, 8>}]} {
    %c0 = arith.constant 0 : index
    %c0_0 = arith.constant 0 : index
    %0 = vector.load %arg1[%c0, %c0_0] : memref<256x8xf32, #tpu.memory_space<vmem>>, vector<256x8xf32>
    %c0_1 = arith.constant 0 : index
    %c0_2 = arith.constant 0 : index
    %1 = vector.load %arg2[%c0_1, %c0_2] : memref<8x8xf32, #tpu.memory_space<vmem>>, vector<1x8xf32>
    %2 = vector.broadcast %1 : vector<1x8xf32> to vector<256x8xf32>
    %3 = arith.mulf %0, %2 : vector<256x8xf32>
    %c1 = arith.constant 1 : index
    %c0_3 = arith.constant 0 : index
    %4 = vector.load %arg2[%c1, %c0_3] : memref<8x8xf32, #tpu.memory_space<vmem>>, vector<1x8xf32>
    %5 = vector.broadcast %4 : vector<1x8xf32> to vector<256x8xf32>
    %6 = arith.addf %3, %5 : vector<256x8xf32>
    %cst = arith.constant 5.000000e-01 : f32
    %7 = vector.broadcast %cst : f32 to vector<256x8xf32>
    %8 = arith.mulf %7, %6 : vector<256x8xf32>
    %9 = math.tanh %8 : vector<256x8xf32>
    %cst_4 = arith.constant 5.000000e-01 : f32
    %10 = vector.broadcast %cst_4 : f32 to vector<256x8xf32>
    %11 = arith.mulf %10, %9 : vector<256x8xf32>
    %cst_5 = arith.constant 5.000000e-01 : f32
    %12 = vector.broadcast %cst_5 : f32 to vector<256x8xf32>
    %13 = arith.addf %11, %12 : vector<256x8xf32>
    %14 = arith.mulf %6, %13 : vector<256x8xf32>
    %c0_6 = arith.constant 0 : index
    %c0_7 = arith.constant 0 : index
    %15 = vector.load %arg3[%c0_6, %c0_7] : memref<256x8xf32, #tpu.memory_space<vmem>>, vector<256x8xf32>
    tpu.vector_store %arg3[%c0_6, %c0_7], %14 {strides = array<i32>} : memref<256x8xf32, #tpu.memory_space<vmem>>, vector<256x8xf32>,
    return
  }
  func.func @transform_0(%arg0: i32) -> (i32, i32) {
    %c0_i32 = arith.constant 0 : i32
    %c0_i32_0 = arith.constant 0 : i32
    return %arg0, %c0_i32 : i32, i32
  }
  func.func @transform_1(%arg0: i32) -> (i32, i32) {
    %c0_i32 = arith.constant 0 : i32
    %c0_i32_0 = arith.constant 0 : i32
    %c0_i32_1 = arith.constant 0 : i32
    return %c0_i32, %c0_i32_0 : i32, i32
  }
  func.func @transform_2(%arg0: i32) -> (i32, i32) {
    %c0_i32 = arith.constant 0 : i32
    %c0_i32_0 = arith.constant 0 : i32
    return %arg0, %c0_i32 : i32, i32
  }
}

</mosaic_0001>

<llo_original>
// kernel: cnn_block.3
$region0: #{cnn_block.3}
  #allocation0 [shape = 'u32[]', space=smem, size = 0x4, offset = 0x4, fixed_abs, tag = 'smem constant byte address 0x4 - core index']
  #allocation1 [shape = 'u32[144,128]{1,0:T(1,128)}', space=vmem, size = 0x12000, scoped, tag = 'internal scratch']
  %s0 = inlined_call_operand.vmem [shape: f32[512,8], index: 0, kind: input, shape index: {}]
  %s1 = inlined_call_operand.vmem [shape: f32[8,8], index: 1, kind: input, shape index: {}]
  %s2 = inlined_call_operand.vmem [shape: f32[512,8], index: 2, kind: output, shape index: {}]
  %s3 = sld [smem:[#allocation0]]
  $region41: #{cnn_block.3} parent=0
    _
  %s5 = ssub.s32 1, %s3
  %s6 = scalar_select 0, %s5, %s3
  loop: start=0, step=1, limit=4
  $region2: #{cnn_block.3} parent=0 // loop_pre_header
    _
  $region3: #{cnn_block.3} parent=0 // loop_header
    %s8 = sphi 0, %s12
    %p9 = scmp.ge.s32.totalorder %s8, 4
    %s18 = sphi 0, %s20
    %s21 = sphi 0, %s18
    %s22 = sphi 0, %s21
    %s38 = sphi 0, %s22
    %s42 = sphi 0, %s42
    %s44 = sphi 0, %s42
    %s45 = sphi 0, %s44
    %s59 = sphi 0, %s45
    %s65 = sphi 0, %s67
    %s68 = sphi 0, %s65
    %s69 = sphi 0, %s68
    %s85 = sphi 0, %s69
  $region4: #{cnn_block.3} parent=0 // loop_header_branch
    %11 = sbr.rel (%p9) target = $region8
  $region5: #{cnn_block.3} parent=0 // loop_body
    %s13 = ssub.s32 %s8, 1
    %s14 = ssub.s32 %s8, 2
    %s15 = sadd.s32 %s8, 1
    %s16 = ssub.s32 %s8, %s15
    %p17 = scmp.eq.s32.totalorder %s16, 0
    %s19 = sadd.s32 %s18, 1
    %s20 = scalar_select %p17, %s18, %s19
    %p23 = pneg %p17
    %p24 = scmp.eq.s32.totalorder %s8, 1
    %p25 = por %p23, %p24
    %p26 = scmp.ne.s32.totalorder %s18, %s21
    %p27 = scmp.eq.s32.totalorder %s8, 0
    %p28 = por %p26, %p27
    %p29 = scmp.ne.s32.totalorder %s18, %s21
    %p30 = scmp.eq.s32.totalorder %s13, 1
    %p31 = por %p29, %p30
    %p32 = scmp.ne.s32.totalorder %s21, %s22
    %p33 = scmp.eq.s32.totalorder %s13, 0
    %p34 = por %p32, %p33
    %p35 = scmp.ne.s32.totalorder %s21, %s22
    %p36 = scmp.eq.s32.totalorder %s14, 1
    %p37 = por %p35, %p36
    %p39 = scmp.ne.s32.totalorder %s22, %s38
    %p40 = scmp.eq.s32.totalorder %s14, 0
    %p41 = por %p39, %p40
    %s43 = sadd.s32 %s42, 1
    %p46 = scmp.eq.s32.totalorder %s8, 1
    %p47 = scmp.ne.s32.totalorder %s42, %s44
    %p48 = scmp.eq.s32.totalorder %s8, 0
    %p49 = por %p47, %p48
    %p50 = scmp.ne.s32.totalorder %s42, %s44
    %p51 = scmp.eq.s32.totalorder %s13, 1
    %p52 = por %p50, %p51
    %p53 = scmp.ne.s32.totalorder %s44, %s45
    %p54 = scmp.eq.s32.totalorder %s13, 0
    %p55 = por %p53, %p54
    %p56 = scmp.ne.s32.totalorder %s44, %s45
    %p57 = scmp.eq.s32.totalorder %s14, 1
    %p58 = por %p56, %p57
    %p60 = scmp.ne.s32.totalorder %s45, %s59
    %p61 = scmp.eq.s32.totalorder %s14, 0
    %p62 = por %p60, %p61
    %s63 = ssub.s32 %s8, %s15
    %p64 = scmp.eq.s32.totalorder %s63, 0
    %s66 = sadd.s32 %s65, 1
    %s67 = scalar_select %p64, %s65, %s66
    %p70 = pneg %p64
    %p71 = scmp.eq.s32.totalorder %s8, 1
    %p72 = por %p70, %p71
    %p73 = scmp.ne.s32.totalorder %s65, %s68
    %p74 = scmp.eq.s32.totalorder %s8, 0
    %p75 = por %p73, %p74
    %p76 = scmp.ne.s32.totalorder %s65, %s68
    %p77 = scmp.eq.s32.totalorder %s13, 1
    %p78 = por %p76, %p77
    %p79 = scmp.ne.s32.totalorder %s68, %s69
    %p80 = scmp.eq.s32.totalorder %s13, 0
    %p81 = por %p79, %p80
    %p82 = scmp.ne.s32.totalorder %s68, %s69
    %p83 = scmp.eq.s32.totalorder %s14, 1
    %p84 = por %p82, %p83
    %p86 = scmp.ne.s32.totalorder %s69, %s85
    %p87 = scmp.eq.s32.totalorder %s14, 0
    %p88 = por %p86, %p87
    %p89 = scmp.le.s32.totalorder 1, %s8
    %p90 = scmp.lt.s32.totalorder %s8, 3
    %p91 = pnand %p89, %p90
    %p92 = pneg %p91
    // Predicated region
    $region9: #{cnn_block.3} parent=5 // pred_check
      _
    $region10: #{cnn_block.3} parent=5 // pred_check_branch
      %94 = sbr.rel (%p91) target = $region12
    $region11: #{cnn_block.3} parent=5 // pred_region
      %s95 = ssub.s32 %s8, 1
      // Predicated region
      $region13: #{cnn_block.3} parent=11 // pred_check
        %p96 = pneg %p55
      $region14: #{cnn_block.3} parent=11 // pred_check_branch
        %98 = sbr.rel (%p96) target = $region16
      $region15: #{cnn_block.3} parent=11 // pred_region
        _
      $region16: #{cnn_block.3} parent=11 // pred_fallthru
        _
    $region12: #{cnn_block.3} parent=5 // pred_fallthru
      _
    %p99 = scmp.lt.s32.totalorder %s8, 2
    // Predicated region
    $region17: #{cnn_block.3} parent=5 // pred_check
      %p100 = pneg %p99
    $region18: #{cnn_block.3} parent=5 // pred_check_branch
      %102 = sbr.rel (%p100) target = $region20
    $region19: #{cnn_block.3} parent=5 // pred_region
      // Predicated region
      $region21: #{cnn_block.3} parent=19 // pred_check
        %p103 = pneg %p28
      $region22: #{cnn_block.3} parent=19 // pred_check_branch
        %105 = sbr.rel (%p103) target = $region24
      $region23: #{cnn_block.3} parent=19 // pred_region
        %s106 = smul.u32 32, %s8
        %p107 = scmp.lt.s32.totalorder %s106, 63
        %s108 = scalar_select %p107, %s106, 63
        %s109 = smul.addr %s108, 8
        %s110 = scalar_lea.vmem %s0, %s109
        %s111 = smul.u32 32, %s8
      $region24: #{cnn_block.3} parent=19 // pred_fallthru
        _
    $region20: #{cnn_block.3} parent=5 // pred_fallthru
      _
    %p112 = scmp.le.s32.totalorder 1, %s8
    %p113 = scmp.lt.s32.totalorder %s8, 3
    %p114 = pnand %p112, %p113
    %p115 = pneg %p114
    // Predicated region
    $region25: #{cnn_block.3} parent=5 // pred_check
      _
    $region26: #{cnn_block.3} parent=5 // pred_check_branch
      %117 = sbr.rel (%p114) target = $region28
    $region27: #{cnn_block.3} parent=5 // pred_region
      %s118 = ssub.s32 %s8, 1
      %s119 = smul.u32 32, %s13
      %p120 = scmp.lt.s32.totalorder %s119, 63
      %s121 = scalar_select %p120, %s119, 63
      %s122 = smul.addr %s121, 8
      %s123 = scalar_lea.vmem %s0, %s122
      %p124 = pneg %p34
      %p125 = pneg %p31
      %p126 = pneg %p55
      %p127 = pneg %p52
      %p128 = pneg %p81
      %p129 = pneg %p78
      %s130 = smul.u32 32, %s13
      %p131 = scmp.lt.s32.totalorder %s130, 63
      %s132 = scalar_select %p131, %s130, 63
      %s133 = smul.addr %s132, 8
      %s134 = scalar_lea.vmem %s2, %s133
      %s135 = smul.u32 32, %s13
      %p136 = scmp.lt.s32.totalorder %s135, 63
      %s137 = scalar_select %p136, %s135, 63
      %s138 = smul.addr %s137, 8
      %s139 = scalar_lea.vmem %s0, %s138
      %s140 = smul.u32 32, %s13
      %s141 = smul.u32 32, %s13
      %p142 = scmp.lt.s32.totalorder %s141, 63
      %s143 = scalar_select %p142, %s141, 63
      %s144 = smul.addr %s143, 8
      %s145 = scalar_lea.vmem %s2, %s144
      %s146 = smul.u32 32, %s13
      %v147 = vld [vmem:[%s139] sm:$0xff]
      %v148 = vld [vmem:[%s139 + $0x8] sm:$0xff]
      %v149 = vld [vmem:[%s139 + $0x10] sm:$0xff]
      %v150 = vld [vmem:[%s139 + $0x18] sm:$0xff]
      %v151 = vld [vmem:[%s139 + $0x20] sm:$0xff]
      %v152 = vld [vmem:[%s139 + $0x28] sm:$0xff]
      %v153 = vld [vmem:[%s139 + $0x30] sm:$0xff]
      %v154 = vld [vmem:[%s139 + $0x38] sm:$0xff]
      %v155 = vld [vmem:[%s139 + $0x40] sm:$0xff]
      %v156 = vld [vmem:[%s139 + $0x48] sm:$0xff]
      %v157 = vld [vmem:[%s139 + $0x50] sm:$0xff]
      %v158 = vld [vmem:[%s139 + $0x58] sm:$0xff]
      %v159 = vld [vmem:[%s139 + $0x60] sm:$0xff]
      %v160 = vld [vmem:[%s139 + $0x68] sm:$0xff]
      %v161 = vld [vmem:[%s139 + $0x70] sm:$0xff]
      %v162 = vld [vmem:[%s139 + $0x78] sm:$0xff]
      %v163 = vld [vmem:[%s139 + $0x80] sm:$0xff]
      %v164 = vld [vmem:[%s139 + $0x88] sm:$0xff]
      %v165 = vld [vmem:[%s139 + $0x90] sm:$0xff]
      %v166 = vld [vmem:[%s139 + $0x98] sm:$0xff]
      %v167 = vld [vmem:[%s139 + $0xa0] sm:$0xff]
      %v168 = vld [vmem:[%s139 + $0xa8] sm:$0xff]
      %v169 = vld [vmem:[%s139 + $0xb0] sm:$0xff]
      %v170 = vld [vmem:[%s139 + $0xb8] sm:$0xff]
      %v171 = vld [vmem:[%s139 + $0xc0] sm:$0xff]
      %v172 = vld [vmem:[%s139 + $0xc8] sm:$0xff]
      %v173 = vld [vmem:[%s139 + $0xd0] sm:$0xff]
      %v174 = vld [vmem:[%s139 + $0xd8] sm:$0xff]
      %v175 = vld [vmem:[%s139 + $0xe0] sm:$0xff]
      %v176 = vld [vmem:[%s139 + $0xe8] sm:$0xff]
      %v177 = vld [vmem:[%s139 + $0xf0] sm:$0xff]
      %v178 = vld [vmem:[%s139 + $0xf8] sm:$0xff]
      %v179 = vld [vmem:[%s1] sm:$0x1]
      %v180 = vlaneseq
      %v181 = vshrl.u32 %v180, 7
      %v182 = vsub.s32 0, %v181
      %v183 = vrot.slane %v179, %v182
      %v184 = vmul.f32 %v147, %v183
      %v185 = vmul.f32 %v148, %v183
      %v186 = vmul.f32 %v149, %v183
      %v187 = vmul.f32 %v150, %v183
      %v188 = vmul.f32 %v151, %v183
      %v189 = vmul.f32 %v152, %v183
      %v190 = vmul.f32 %v153, %v183
      %v191 = vmul.f32 %v154, %v183
      %v192 = vmul.f32 %v155, %v183
      %v193 = vmul.f32 %v156, %v183
      %v194 = vmul.f32 %v157, %v183
      %v195 = vmul.f32 %v158, %v183
      %v196 = vmul.f32 %v159, %v183
      %v197 = vmul.f32 %v160, %v183
      %v198 = vmul.f32 %v161, %v183
      %v199 = vmul.f32 %v162, %v183
      %v200 = vmul.f32 %v163, %v183
      %v201 = vmul.f32 %v164, %v183
      %v202 = vmul.f32 %v165, %v183
      %v203 = vmul.f32 %v166, %v183
      %v204 = vmul.f32 %v167, %v183
      %v205 = vmul.f32 %v168, %v183
      %v206 = vmul.f32 %v169, %v183
      %v207 = vmul.f32 %v170, %v183
      %v208 = vmul.f32 %v171, %v183
      %v209 = vmul.f32 %v172, %v183
      %v210 = vmul.f32 %v173, %v183
      %v211 = vmul.f32 %v174, %v183
      %v212 = vmul.f32 %v175, %v183
      %v213 = vmul.f32 %v176, %v183
      %v214 = vmul.f32 %v177, %v183
      %v215 = vmul.f32 %v178, %v183
      %v216 = vld [vmem:[%s1 + $0x1] sm:$0x1]
      %v217 = vlaneseq
      %v218 = vshrl.u32 %v217, 7
      %v219 = vsub.s32 0, %v218
      %v220 = vrot.slane %v216, %v219
      %v221 = vadd.f32 %v184, %v220
      %v222 = vadd.f32 %v185, %v220
      %v223 = vadd.f32 %v186, %v220
      %v224 = vadd.f32 %v187, %v220
      %v225 = vadd.f32 %v188, %v220
      %v226 = vadd.f32 %v189, %v220
      %v227 = vadd.f32 %v190, %v220
      %v228 = vadd.f32 %v191, %v220
      %v229 = vadd.f32 %v192, %v220
      %v230 = vadd.f32 %v193, %v220
      %v231 = vadd.f32 %v194, %v220
      %v232 = vadd.f32 %v195, %v220
      %v233 = vadd.f32 %v196, %v220
      %v234 = vadd.f32 %v197, %v220
      %v235 = vadd.f32 %v198, %v220
      %v236 = vadd.f32 %v199, %v220
      %v237 = vadd.f32 %v200, %v220
      %v238 = vadd.f32 %v201, %v220
      %v239 = vadd.f32 %v202, %v220
      %v240 = vadd.f32 %v203, %v220
      %v241 = vadd.f32 %v204, %v220
      %v242 = vadd.f32 %v205, %v220
      %v243 = vadd.f32 %v206, %v220
      %v244 = vadd.f32 %v207, %v220
      %v245 = vadd.f32 %v208, %v220
      %v246 = vadd.f32 %v209, %v220
      %v247 = vadd.f32 %v210, %v220
      %v248 = vadd.f32 %v211, %v220
      %v249 = vadd.f32 %v212, %v220
      %v250 = vadd.f32 %v213, %v220
      %v251 = vadd.f32 %v214, %v220
      %v252 = vadd.f32 %v215, %v220
      %v253 = vmul.f32 %v221, 0.5
      %v254 = vmul.f32 %v222, 0.5
      %v255 = vmul.f32 %v223, 0.5
      %v256 = vmul.f32 %v224, 0.5
      %v257 = vmul.f32 %v225, 0.5
      %v258 = vmul.f32 %v226, 0.5
      %v259 = vmul.f32 %v227, 0.5
      %v260 = vmul.f32 %v228, 0.5
      %v261 = vmul.f32 %v229, 0.5
      %v262 = vmul.f32 %v230, 0.5
      %v263 = vmul.f32 %v231, 0.5
      %v264 = vmul.f32 %v232, 0.5
      %v265 = vmul.f32 %v233, 0.5
      %v266 = vmul.f32 %v234, 0.5
      %v267 = vmul.f32 %v235, 0.5
      %v268 = vmul.f32 %v236, 0.5
      %v269 = vmul.f32 %v237, 0.5
      %v270 = vmul.f32 %v238, 0.5
      %v271 = vmul.f32 %v239, 0.5
      %v272 = vmul.f32 %v240, 0.5
      %v273 = vmul.f32 %v241, 0.5
      %v274 = vmul.f32 %v242, 0.5
      %v275 = vmul.f32 %v243, 0.5
      %v276 = vmul.f32 %v244, 0.5
      %v277 = vmul.f32 %v245, 0.5
      %v278 = vmul.f32 %v246, 0.5
      %v279 = vmul.f32 %v247, 0.5
      %v280 = vmul.f32 %v248, 0.5
      %v281 = vmul.f32 %v249, 0.5
      %v282 = vmul.f32 %v250, 0.5
      %v283 = vmul.f32 %v251, 0.5
      %v284 = vmul.f32 %v252, 0.5
      %v285 = vtanh.pop %v253
      %v286 = vtanh.pop %v254
      %v287 = vtanh.pop %v255
      %v288 = vtanh.pop %v256
      %v289 = vtanh.pop %v257
      %v290 = vtanh.pop %v258
      %v291 = vtanh.pop %v259
      %v292 = vtanh.pop %v260
      %v293 = vtanh.pop %v261
      %v294 = vtanh.pop %v262
      %v295 = vtanh.pop %v263
      %v296 = vtanh.pop %v264
      %v297 = vtanh.pop %v265
      %v298 = vtanh.pop %v266
      %v299 = vtanh.pop %v267
      %v300 = vtanh.pop %v268
      %v301 = vtanh.pop %v269
      %v302 = vtanh.pop %v270
      %v303 = vtanh.pop %v271
      %v304 = vtanh.pop %v272
      %v305 = vtanh.pop %v273
      %v306 = vtanh.pop %v274
      %v307 = vtanh.pop %v275
      %v308 = vtanh.pop %v276
      %v309 = vtanh.pop %v277
      %v310 = vtanh.pop %v278
      %v311 = vtanh.pop %v279
      %v312 = vtanh.pop %v280
      %v313 = vtanh.pop %v281
      %v314 = vtanh.pop %v282
      %v315 = vtanh.pop %v283
      %v316 = vtanh.pop %v284
      %v317 = vmul.f32 %v285, 0.5
      %v318 = vmul.f32 %v286, 0.5
      %v319 = vmul.f32 %v287, 0.5
      %v320 = vmul.f32 %v288, 0.5
      %v321 = vmul.f32 %v289, 0.5
      %v322 = vmul.f32 %v290, 0.5
      %v323 = vmul.f32 %v291, 0.5
      %v324 = vmul.f32 %v292, 0.5
      %v325 = vmul.f32 %v293, 0.5
      %v326 = vmul.f32 %v294, 0.5
      %v327 = vmul.f32 %v295, 0.5
      %v328 = vmul.f32 %v296, 0.5
      %v329 = vmul.f32 %v297, 0.5
      %v330 = vmul.f32 %v298, 0.5
      %v331 = vmul.f32 %v299, 0.5
      %v332 = vmul.f32 %v300, 0.5
      %v333 = vmul.f32 %v301, 0.5
      %v334 = vmul.f32 %v302, 0.5
      %v335 = vmul.f32 %v303, 0.5
      %v336 = vmul.f32 %v304, 0.5
      %v337 = vmul.f32 %v305, 0.5
      %v338 = vmul.f32 %v306, 0.5
      %v339 = vmul.f32 %v307, 0.5
      %v340 = vmul.f32 %v308, 0.5
      %v341 = vmul.f32 %v309, 0.5
      %v342 = vmul.f32 %v310, 0.5
      %v343 = vmul.f32 %v311, 0.5
      %v344 = vmul.f32 %v312, 0.5
      %v345 = vmul.f32 %v313, 0.5
      %v346 = vmul.f32 %v314, 0.5
      %v347 = vmul.f32 %v315, 0.5
      %v348 = vmul.f32 %v316, 0.5
      %v349 = vadd.f32 %v317, 0.5
      %v350 = vadd.f32 %v318, 0.5
      %v351 = vadd.f32 %v319, 0.5
      %v352 = vadd.f32 %v320, 0.5
      %v353 = vadd.f32 %v321, 0.5
      %v354 = vadd.f32 %v322, 0.5
      %v355 = vadd.f32 %v323, 0.5
      %v356 = vadd.f32 %v324, 0.5
      %v357 = vadd.f32 %v325, 0.5
      %v358 = vadd.f32 %v326, 0.5
      %v359 = vadd.f32 %v327, 0.5
      %v360 = vadd.f32 %v328, 0.5
      %v361 = vadd.f32 %v329, 0.5
      %v362 = vadd.f32 %v330, 0.5
      %v363 = vadd.f32 %v331, 0.5
      %v364 = vadd.f32 %v332, 0.5
      %v365 = vadd.f32 %v333, 0.5
      %v366 = vadd.f32 %v334, 0.5
      %v367 = vadd.f32 %v335, 0.5
      %v368 = vadd.f32 %v336, 0.5
      %v369 = vadd.f32 %v337, 0.5
      %v370 = vadd.f32 %v338, 0.5
      %v371 = vadd.f32 %v339, 0.5
      %v372 = vadd.f32 %v340, 0.5
      %v373 = vadd.f32 %v341, 0.5
      %v374 = vadd.f32 %v342, 0.5
      %v375 = vadd.f32 %v343, 0.5
      %v376 = vadd.f32 %v344, 0.5
      %v377 = vadd.f32 %v345, 0.5
      %v378 = vadd.f32 %v346, 0.5
      %v379 = vadd.f32 %v347, 0.5
      %v380 = vadd.f32 %v348, 0.5
      %v381 = vmul.f32 %v221, %v349
      %v382 = vmul.f32 %v222, %v350
      %v383 = vmul.f32 %v223, %v351
      %v384 = vmul.f32 %v224, %v352
      %v385 = vmul.f32 %v225, %v353
      %v386 = vmul.f32 %v226, %v354
      %v387 = vmul.f32 %v227, %v355
      %v388 = vmul.f32 %v228, %v356
      %v389 = vmul.f32 %v229, %v357
      %v390 = vmul.f32 %v230, %v358
      %v391 = vmul.f32 %v231, %v359
      %v392 = vmul.f32 %v232, %v360
      %v393 = vmul.f32 %v233, %v361
      %v394 = vmul.f32 %v234, %v362
      %v395 = vmul.f32 %v235, %v363
      %v396 = vmul.f32 %v236, %v364
      %v397 = vmul.f32 %v237, %v365
      %v398 = vmul.f32 %v238, %v366
      %v399 = vmul.f32 %v239, %v367
      %v400 = vmul.f32 %v240, %v368
      %v401 = vmul.f32 %v241, %v369
      %v402 = vmul.f32 %v242, %v370
      %v403 = vmul.f32 %v243, %v371
      %v404 = vmul.f32 %v244, %v372
      %v405 = vmul.f32 %v245, %v373
      %v406 = vmul.f32 %v246, %v374
      %v407 = vmul.f32 %v247, %v375
      %v408 = vmul.f32 %v248, %v376
      %v409 = vmul.f32 %v249, %v377
      %v410 = vmul.f32 %v250, %v378
      %v411 = vmul.f32 %v251, %v379
      %v412 = vmul.f32 %v252, %v380
      %vm413 = vcmask 64512
      %414 = vst.msk [vmem:[%s145] sm:$0xff] %vm413, %v381
      %415 = vst.msk [vmem:[%s145 + $0x8] sm:$0xff] %vm413, %v382
      %416 = vst.msk [vmem:[%s145 + $0x10] sm:$0xff] %vm413, %v383
      %417 = vst.msk [vmem:[%s145 + $0x18] sm:$0xff] %vm413, %v384
      %418 = vst.msk [vmem:[%s145 + $0x20] sm:$0xff] %vm413, %v385
      %419 = vst.msk [vmem:[%s145 + $0x28] sm:$0xff] %vm413, %v386
      %420 = vst.msk [vmem:[%s145 + $0x30] sm:$0xff] %vm413, %v387
      %421 = vst.msk [vmem:[%s145 + $0x38] sm:$0xff] %vm413, %v388
      %422 = vst.msk [vmem:[%s145 + $0x40] sm:$0xff] %vm413, %v389
      %423 = vst.msk [vmem:[%s145 + $0x48] sm:$0xff] %vm413, %v390
      %424 = vst.msk [vmem:[%s145 + $0x50] sm:$0xff] %vm413, %v391
      %425 = vst.msk [vmem:[%s145 + $0x58] sm:$0xff] %vm413, %v392
      %426 = vst.msk [vmem:[%s145 + $0x60] sm:$0xff] %vm413, %v393
      %427 = vst.msk [vmem:[%s145 + $0x68] sm:$0xff] %vm413, %v394
      %428 = vst.msk [vmem:[%s145 + $0x70] sm:$0xff] %vm413, %v395
      %429 = vst.msk [vmem:[%s145 + $0x78] sm:$0xff] %vm413, %v396
      %430 = vst.msk [vmem:[%s145 + $0x80] sm:$0xff] %vm413, %v397
      %431 = vst.msk [vmem:[%s145 + $0x88] sm:$0xff] %vm413, %v398
      %432 = vst.msk [vmem:[%s145 + $0x90] sm:$0xff] %vm413, %v399
      %433 = vst.msk [vmem:[%s145 + $0x98] sm:$0xff] %vm413, %v400
      %434 = vst.msk [vmem:[%s145 + $0xa0] sm:$0xff] %vm413, %v401
      %435 = vst.msk [vmem:[%s145 + $0xa8] sm:$0xff] %vm413, %v402
      %436 = vst.msk [vmem:[%s145 + $0xb0] sm:$0xff] %vm413, %v403
      %437 = vst.msk [vmem:[%s145 + $0xb8] sm:$0xff] %vm413, %v404
      %438 = vst.msk [vmem:[%s145 + $0xc0] sm:$0xff] %vm413, %v405
      %439 = vst.msk [vmem:[%s145 + $0xc8] sm:$0xff] %vm413, %v406
      %440 = vst.msk [vmem:[%s145 + $0xd0] sm:$0xff] %vm413, %v407
      %441 = vst.msk [vmem:[%s145 + $0xd8] sm:$0xff] %vm413, %v408
      %442 = vst.msk [vmem:[%s145 + $0xe0] sm:$0xff] %vm413, %v409
      %443 = vst.msk [vmem:[%s145 + $0xe8] sm:$0xff] %vm413, %v410
      %444 = vst.msk [vmem:[%s145 + $0xf0] sm:$0xff] %vm413, %v411
      %445 = vst.msk [vmem:[%s145 + $0xf8] sm:$0xff] %vm413, %v412
      %s446 = smul.u32 32, %s13
      %p447 = scmp.lt.s32.totalorder %s446, 63
      %s448 = scalar_select %p447, %s446, 63
      %s449 = smul.addr %s448, 8
      %s450 = scalar_lea.vmem %s2, %s449
      // Predicated region
      $region29: #{cnn_block.3} parent=27 // pred_check
        %p451 = pneg %p78
      $region30: #{cnn_block.3} parent=27 // pred_check_branch
        %453 = sbr.rel (%p451) target = $region32
      $region31: #{cnn_block.3} parent=27 // pred_region
        %s454 = smul.u32 32, %s13
      $region32: #{cnn_block.3} parent=27 // pred_fallthru
        _
    $region28: #{cnn_block.3} parent=5 // pred_fallthru
      _
    %p455 = scmp.le.s32.totalorder 2, %s8
    // Predicated region
    $region33: #{cnn_block.3} parent=5 // pred_check
      %p456 = pneg %p455
    $region34: #{cnn_block.3} parent=5 // pred_check_branch
      %458 = sbr.rel (%p456) target = $region36
    $region35: #{cnn_block.3} parent=5 // pred_region
      %s459 = ssub.s32 %s8, 2
      // Predicated region
      $region37: #{cnn_block.3} parent=35 // pred_check
        %p460 = pneg %p84
      $region38: #{cnn_block.3} parent=35 // pred_check_branch
        %462 = sbr.rel (%p460) target = $region40
      $region39: #{cnn_block.3} parent=35 // pred_region
        %s463 = smul.u32 32, %s14
        %p464 = scmp.lt.s32.totalorder %s463, 63
        %s465 = scalar_select %p464, %s463, 63
        %s466 = smul.addr %s465, 8
        %s467 = scalar_lea.vmem %s2, %s466
      $region40: #{cnn_block.3} parent=35 // pred_fallthru
        _
    $region36: #{cnn_block.3} parent=5 // pred_fallthru
      _
  $region6: #{cnn_block.3} parent=0 // loop_footer
    %s12 = sadd.s32 1, %s8
  $region7: #{cnn_block.3} parent=0 // loop_footer_branch
    %7 = sbr.rel target = $region3
  $region8: #{cnn_block.3} parent=0 // loop_exit
    _

// kernel: cnn_block.2
$region0: #{cnn_block.2}
  #allocation0 [shape = 'u32[]', space=smem, size = 0x4, offset = 0x4, fixed_abs, tag = 'smem constant byte address 0x4 - core index']
  #allocation1 [shape = 'u32[144,128]{1,0:T(1,128)}', space=vmem, size = 0x12000, scoped, tag = 'internal scratch']
  %s0 = inlined_call_operand.vmem [shape: bf16[512,36], index: 0, kind: input, shape index: {}]
  %s1 = inlined_call_operand.vmem [shape: bf16[36,8], index: 1, kind: input, shape index: {}]
  %s2 = inlined_call_operand.vmem [shape: f32[2,8,8], index: 2, kind: output, shape index: {0}]
  %s3 = inlined_call_operand.vmem [shape: f32[512,8], index: 3, kind: output, shape index: {1}]
  %4 = xla_tuple %s2, %s3
  %s5 = sld [smem:[#allocation0]]
  $region53: #{cnn_block.2} parent=0
    _
  %s7 = ssub.s32 1, %s5
  %s8 = scalar_select 0, %s7, %s5
  loop: start=0, step=1, limit=4
  $region2: #{cnn_block.2} parent=0 // loop_pre_header
    _
  $region3: #{cnn_block.2} parent=0 // loop_header
    %s10 = sphi 0, %s14
    %p11 = scmp.ge.s32.totalorder %s10, 4
    %s17 = sphi 0, %s29
    %s18 = sphi 0, %s25
    %s19 = sphi 0, %s17
    %s20 = sphi 0, %s18
    %s21 = sphi 0, %s19
    %s22 = sphi 0, %s20
    %s34 = sphi 0, %s36
    %s37 = sphi 0, %s34
    %s38 = sphi 0, %s37
    %s54 = sphi 0, %s38
    %s58 = sphi 0, %s58
    %s60 = sphi 0, %s58
    %s61 = sphi 0, %s60
    %s75 = sphi 0, %s61
    %s81 = sphi 0, %s83
    %s84 = sphi 0, %s81
    %s85 = sphi 0, %s84
    %s101 = sphi 0, %s85
    %s109 = sphi 0, %s111
    %s112 = sphi 0, %s109
    %s113 = sphi 0, %s112
    %s129 = sphi 0, %s113
  $region4: #{cnn_block.2} parent=0 // loop_header_branch
    %13 = sbr.rel (%p11) target = $region8
  $region5: #{cnn_block.2} parent=0 // loop_body
    %s15 = ssub.s32 %s10, 1
    %s16 = ssub.s32 %s10, 2
    %s23 = sadd.s32 1, %s18
    %p24 = scmp.ge.s32.totalorder %s23, 1
    %s25 = scalar_select %p24, 0, %s23
    %s26 = sadd.s32 1, %s17
    %s27 = scalar_select %p24, %s26, %s17
    %p28 = scmp.ge.s32.totalorder %s27, 2
    %s29 = scalar_select %p28, 0, %s27
    %s30 = sadd.s32 %s17, %s18
    %s31 = sadd.s32 %s29, %s25
    %s32 = ssub.s32 %s30, %s31
    %p33 = scmp.eq.s32.totalorder %s32, 0
    %s35 = sadd.s32 %s34, 1
    %s36 = scalar_select %p33, %s34, %s35
    %p39 = pneg %p33
    %p40 = scmp.eq.s32.totalorder %s10, 1
    %p41 = por %p39, %p40
    %p42 = scmp.ne.s32.totalorder %s34, %s37
    %p43 = scmp.eq.s32.totalorder %s10, 0
    %p44 = por %p42, %p43
    %p45 = scmp.ne.s32.totalorder %s34, %s37
    %p46 = scmp.eq.s32.totalorder %s15, 1
    %p47 = por %p45, %p46
    %p48 = scmp.ne.s32.totalorder %s37, %s38
    %p49 = scmp.eq.s32.totalorder %s15, 0
    %p50 = por %p48, %p49
    %p51 = scmp.ne.s32.totalorder %s37, %s38
    %p52 = scmp.eq.s32.totalorder %s16, 1
    %p53 = por %p51, %p52
    %p55 = scmp.ne.s32.totalorder %s38, %s54
    %p56 = scmp.eq.s32.totalorder %s16, 0
    %p57 = por %p55, %p56
    %s59 = sadd.s32 %s58, 1
    %p62 = scmp.eq.s32.totalorder %s10, 1
    %p63 = scmp.ne.s32.totalorder %s58, %s60
    %p64 = scmp.eq.s32.totalorder %s10, 0
    %p65 = por %p63, %p64
    %p66 = scmp.ne.s32.totalorder %s58, %s60
    %p67 = scmp.eq.s32.totalorder %s15, 1
    %p68 = por %p66, %p67
    %p69 = scmp.ne.s32.totalorder %s60, %s61
    %p70 = scmp.eq.s32.totalorder %s15, 0
    %p71 = por %p69, %p70
    %p72 = scmp.ne.s32.totalorder %s60, %s61
    %p73 = scmp.eq.s32.totalorder %s16, 1
    %p74 = por %p72, %p73
    %p76 = scmp.ne.s32.totalorder %s61, %s75
    %p77 = scmp.eq.s32.totalorder %s16, 0
    %p78 = por %p76, %p77
    %s79 = ssub.s32 %s17, %s29
    %p80 = scmp.eq.s32.totalorder %s79, 0
    %s82 = sadd.s32 %s81, 1
    %s83 = scalar_select %p80, %s81, %s82
    %p86 = pneg %p80
    %p87 = scmp.eq.s32.totalorder %s10, 1
    %p88 = por %p86, %p87
    %p89 = scmp.ne.s32.totalorder %s81, %s84
    %p90 = scmp.eq.s32.totalorder %s10, 0
    %p91 = por %p89, %p90
    %p92 = scmp.ne.s32.totalorder %s81, %s84
    %p93 = scmp.eq.s32.totalorder %s15, 1
    %p94 = por %p92, %p93
    %p95 = scmp.ne.s32.totalorder %s84, %s85
    %p96 = scmp.eq.s32.totalorder %s15, 0
    %p97 = por %p95, %p96
    %p98 = scmp.ne.s32.totalorder %s84, %s85
    %p99 = scmp.eq.s32.totalorder %s16, 1
    %p100 = por %p98, %p99
    %p102 = scmp.ne.s32.totalorder %s85, %s101
    %p103 = scmp.eq.s32.totalorder %s16, 0
    %p104 = por %p102, %p103
    %s105 = sadd.s32 %s17, %s18
    %s106 = sadd.s32 %s29, %s25
    %s107 = ssub.s32 %s105, %s106
    %p108 = scmp.eq.s32.totalorder %s107, 0
    %s110 = sadd.s32 %s109, 1
    %s111 = scalar_select %p108, %s109, %s110
    %p114 = pneg %p108
    %p115 = scmp.eq.s32.totalorder %s10, 1
    %p116 = por %p114, %p115
    %p117 = scmp.ne.s32.totalorder %s109, %s112
    %p118 = scmp.eq.s32.totalorder %s10, 0
    %p119 = por %p117, %p118
    %p120 = scmp.ne.s32.totalorder %s109, %s112
    %p121 = scmp.eq.s32.totalorder %s15, 1
    %p122 = por %p120, %p121
    %p123 = scmp.ne.s32.totalorder %s112, %s113
    %p124 = scmp.eq.s32.totalorder %s15, 0
    %p125 = por %p123, %p124
    %p126 = scmp.ne.s32.totalorder %s112, %s113
    %p127 = scmp.eq.s32.totalorder %s16, 1
    %p128 = por %p126, %p127
    %p130 = scmp.ne.s32.totalorder %s113, %s129
    %p131 = scmp.eq.s32.totalorder %s16, 0
    %p132 = por %p130, %p131
    %p133 = scmp.le.s32.totalorder 1, %s10
    %p134 = scmp.lt.s32.totalorder %s10, 3
    %p135 = pnand %p133, %p134
    %p136 = pneg %p135
    // Predicated region
    $region9: #{cnn_block.2} parent=5 // pred_check
      _
    $region10: #{cnn_block.2} parent=5 // pred_check_branch
      %138 = sbr.rel (%p135) target = $region12
    $region11: #{cnn_block.2} parent=5 // pred_region
      %s139 = ssub.s32 %s10, 1
      // Predicated region
      $region13: #{cnn_block.2} parent=11 // pred_check
        %p140 = pneg %p71
      $region14: #{cnn_block.2} parent=11 // pred_check_branch
        %142 = sbr.rel (%p140) target = $region16
      $region15: #{cnn_block.2} parent=11 // pred_region
        _
      $region16: #{cnn_block.2} parent=11 // pred_fallthru
        _
    $region12: #{cnn_block.2} parent=5 // pred_fallthru
      _
    %p143 = scmp.lt.s32.totalorder %s10, 2
    // Predicated region
    $region17: #{cnn_block.2} parent=5 // pred_check
      %p144 = pneg %p143
    $region18: #{cnn_block.2} parent=5 // pred_check_branch
      %146 = sbr.rel (%p144) target = $region20
    $region19: #{cnn_block.2} parent=5 // pred_region
      // Predicated region
      $region21: #{cnn_block.2} parent=19 // pred_check
        %p147 = pneg %p44
      $region22: #{cnn_block.2} parent=19 // pred_check_branch
        %149 = sbr.rel (%p147) target = $region24
      $region23: #{cnn_block.2} parent=19 // pred_region
        %s150 = sadd.s32 %s17, %s18
        %s151 = smul.u32 32, %s150
        %p152 = scmp.lt.s32.totalorder %s151, 63
        %s153 = scalar_select %p152, %s151, 63
        %s154 = smul.addr %s153, 4
        %s155 = scalar_lea.vmem %s0, %s154
        %s156 = sadd.s32 %s17, %s18
        %s157 = smul.u32 32, %s156
      $region24: #{cnn_block.2} parent=19 // pred_fallthru
        _
    $region20: #{cnn_block.2} parent=5 // pred_fallthru
      _
    %p158 = scmp.le.s32.totalorder 1, %s10
    %p159 = scmp.lt.s32.totalorder %s10, 3
    %p160 = pnand %p158, %p159
    %p161 = pneg %p160
    // Predicated region
    $region25: #{cnn_block.2} parent=5 // pred_check
      _
    $region26: #{cnn_block.2} parent=5 // pred_check_branch
      %163 = sbr.rel (%p160) target = $region28
    $region27: #{cnn_block.2} parent=5 // pred_region
      %s164 = ssub.s32 %s10, 1
      %s165 = sadd.s32 %s19, %s20
      %s166 = smul.u32 32, %s165
      %p167 = scmp.lt.s32.totalorder %s166, 63
      %s168 = scalar_select %p167, %s166, 63
      %s169 = smul.addr %s168, 4
      %s170 = scalar_lea.vmem %s0, %s169
      %p171 = pneg %p50
      %p172 = pneg %p47
      %p173 = pneg %p71
      %p174 = pneg %p68
      %p175 = pneg %p97
      %p176 = pneg %p94
      %p177 = scmp.lt.s32.totalorder %s19, 1
      %s178 = scalar_select %p177, %s19, 1
      %s179 = smul.addr %s178, 8
      %s180 = scalar_lea.vmem %s2, %s179
      %p181 = pneg %p125
      %p182 = pneg %p122
      %s183 = sadd.s32 %s19, %s20
      %s184 = smul.u32 32, %s183
      %p185 = scmp.lt.s32.totalorder %s184, 63
      %s186 = scalar_select %p185, %s184, 63
      %s187 = smul.addr %s186, 8
      %s188 = scalar_lea.vmem %s3, %s187
      %s189 = sadd.s32 %s19, %s20
      %s190 = smul.u32 32, %s189
      %p191 = scmp.lt.s32.totalorder %s190, 63
      %s192 = scalar_select %p191, %s190, 63
      %s193 = smul.addr %s192, 4
      %s194 = scalar_lea.vmem %s0, %s193
      %s195 = sadd.s32 %s19, %s20
      %s196 = smul.u32 32, %s195
      %p197 = scmp.lt.s32.totalorder %s19, 1
      %s198 = scalar_select %p197, %s19, 1
      %s199 = smul.addr %s198, 8
      %s200 = scalar_lea.vmem %s2, %s199
      %s201 = sadd.s32 %s19, %s20
      %s202 = smul.u32 32, %s201
      %p203 = scmp.lt.s32.totalorder %s202, 63
      %s204 = scalar_select %p203, %s202, 63
      %s205 = smul.addr %s204, 8
      %s206 = scalar_lea.vmem %s3, %s205
      %s207 = sadd.s32 %s19, %s20
      %s208 = smul.u32 32, %s207
      %p210 = scmp.eq.s32.totalorder %s20, 0
      // Predicated region
      $region29: #{cnn_block.2} parent=27 // pred_check
        %p211 = pneg %p210
      $region30: #{cnn_block.2} parent=27 // pred_check_branch
        %213 = sbr.rel (%p211) target = $region32
      $region31: #{cnn_block.2} parent=27 // pred_region
        %vm214 = vcmask 64512
        %215 = vst.msk [vmem:[%s200] sm:$0xff] %vm214, 0.0
      $region32: #{cnn_block.2} parent=27 // pred_fallthru
        _
      %v216 = vld [vmem:[%s194] sm:$0xf]
      %v217 = vld [vmem:[%s194 + $0x4] sm:$0xf]
      %v218 = vld [vmem:[%s194 + $0x8] sm:$0xf]
      %v219 = vld [vmem:[%s194 + $0xc] sm:$0xf]
      %v220 = vld [vmem:[%s194 + $0x10] sm:$0xf]
      %v221 = vld [vmem:[%s194 + $0x14] sm:$0xf]
      %v222 = vld [vmem:[%s194 + $0x18] sm:$0xf]
      %v223 = vld [vmem:[%s194 + $0x1c] sm:$0xf]
      %v224 = vld [vmem:[%s194 + $0x20] sm:$0xf]
      %v225 = vld [vmem:[%s194 + $0x24] sm:$0xf]
      %v226 = vld [vmem:[%s194 + $0x28] sm:$0xf]
      %v227 = vld [vmem:[%s194 + $0x2c] sm:$0xf]
      %v228 = vld [vmem:[%s194 + $0x30] sm:$0xf]
      %v229 = vld [vmem:[%s194 + $0x34] sm:$0xf]
      %v230 = vld [vmem:[%s194 + $0x38] sm:$0xf]
      %v231 = vld [vmem:[%s194 + $0x3c] sm:$0xf]
      %v232 = vld [vmem:[%s194 + $0x40] sm:$0xf]
      %v233 = vld [vmem:[%s194 + $0x44] sm:$0xf]
      %v234 = vld [vmem:[%s194 + $0x48] sm:$0xf]
      %v235 = vld [vmem:[%s194 + $0x4c] sm:$0xf]
      %v236 = vld [vmem:[%s194 + $0x50] sm:$0xf]
      %v237 = vld [vmem:[%s194 + $0x54] sm:$0xf]
      %v238 = vld [vmem:[%s194 + $0x58] sm:$0xf]
      %v239 = vld [vmem:[%s194 + $0x5c] sm:$0xf]
      %v240 = vld [vmem:[%s194 + $0x60] sm:$0xf]
      %v241 = vld [vmem:[%s194 + $0x64] sm:$0xf]
      %v242 = vld [vmem:[%s194 + $0x68] sm:$0xf]
      %v243 = vld [vmem:[%s194 + $0x6c] sm:$0xf]
      %v244 = vld [vmem:[%s194 + $0x70] sm:$0xf]
      %v245 = vld [vmem:[%s194 + $0x74] sm:$0xf]
      %v246 = vld [vmem:[%s194 + $0x78] sm:$0xf]
      %v247 = vld [vmem:[%s194 + $0x7c] sm:$0xf]
      %v248 = vld [vmem:[%s1] sm:$0xf]
      %v249 = vld [vmem:[%s1 + $0x4] sm:$0xf]
      %v250 = vld [vmem:[%s1 + $0x8] sm:$0xf]
      %v251 = vld [vmem:[%s1 + $0xc] sm:$0xf]
      %v252 = vld [vmem:[%s1 + $0x10] sm:$0x3]
      %v285 = vunpack.c.l.b16 %v216
      %v286 = vunpack.c.l.b16 %v217
      %v287 = vunpack.c.l.b16 %v218
      %v288 = vunpack.c.l.b16 %v219
      %v289 = vunpack.c.l.b16 %v220
      %v290 = vunpack.c.l.b16 %v221
      %v291 = vunpack.c.l.b16 %v222
      %v292 = vunpack.c.l.b16 %v223
      %v293 = vunpack.c.l.b16 %v224
      %v294 = vunpack.c.l.b16 %v225
      %v295 = vunpack.c.l.b16 %v226
      %v296 = vunpack.c.l.b16 %v227
      %v297 = vunpack.c.l.b16 %v228
      %v298 = vunpack.c.l.b16 %v229
      %v299 = vunpack.c.l.b16 %v230
      %v300 = vunpack.c.l.b16 %v231
      %v301 = vunpack.c.l.b16 %v232
      %v302 = vunpack.c.l.b16 %v233
      %v303 = vunpack.c.l.b16 %v234
      %v304 = vunpack.c.l.b16 %v235
      %v305 = vunpack.c.l.b16 %v236
      %v306 = vunpack.c.l.b16 %v237
      %v307 = vunpack.c.l.b16 %v238
      %v308 = vunpack.c.l.b16 %v239
      %v309 = vunpack.c.l.b16 %v240
      %v310 = vunpack.c.l.b16 %v241
      %v311 = vunpack.c.l.b16 %v242
      %v312 = vunpack.c.l.b16 %v243
      %v313 = vunpack.c.l.b16 %v244
      %v314 = vunpack.c.l.b16 %v245
      %v315 = vunpack.c.l.b16 %v246
      %v316 = vunpack.c.l.b16 %v247
      %v317 = vpack.c.b16 %v286, %v285
      %v318 = vpack.c.b16 %v288, %v287
      %v319 = vpack.c.b16 %v290, %v289
      %v320 = vpack.c.b16 %v292, %v291
      %v321 = vpack.c.b16 %v294, %v293
      %v322 = vpack.c.b16 %v296, %v295
      %v323 = vpack.c.b16 %v298, %v297
      %v324 = vpack.c.b16 %v300, %v299
      %v325 = vpack.c.b16 %v302, %v301
      %v326 = vpack.c.b16 %v304, %v303
      %v327 = vpack.c.b16 %v306, %v305
      %v328 = vpack.c.b16 %v308, %v307
      %v329 = vpack.c.b16 %v310, %v309
      %v330 = vpack.c.b16 %v312, %v311
      %v331 = vpack.c.b16 %v314, %v313
      %v332 = vpack.c.b16 %v316, %v315
      %v338 = vunpack.c.l.b16 %v248
      %v339 = vunpack.c.l.b16 %v249
      %v340 = vunpack.c.l.b16 %v250
      %v341 = vunpack.c.l.b16 %v251
      %v342 = vunpack.c.l.b16 %v252
      %v343 = vpack.c.b16 %v339, %v338
      %v344 = vpack.c.b16 %v341, %v340
      %v345 = vpack.c.b16 %v342, %v342
      %vm348 = vcmask 293888
      %v350 = vsel %vm348, %v317, 0
      %v353 = vsel %vm348, %v318, 0
      %v356 = vsel %vm348, %v319, 0
      %v359 = vsel %vm348, %v320, 0
      %v362 = vsel %vm348, %v321, 0
      %v365 = vsel %vm348, %v322, 0
      %v368 = vsel %vm348, %v323, 0
      %v371 = vsel %vm348, %v324, 0
      %v374 = vsel %vm348, %v325, 0
      %v377 = vsel %vm348, %v326, 0
      %v380 = vsel %vm348, %v327, 0
      %v383 = vsel %vm348, %v328, 0
      %v386 = vsel %vm348, %v329, 0
      %v389 = vsel %vm348, %v330, 0
      %v392 = vsel %vm348, %v331, 0
      %v395 = vsel %vm348, %v332, 0
      %vm397 = vcmask 1041408
      %v399 = vsel %vm397, %v345, 0
      %401 = vmatprep.subr.bf16.mxu0 0
      %402 = vmatpush1.bf16.msra.mxu0 %v343
      %403 = vmatprep.subr.bf16.mxu0 0
      %404 = vmatpush1.bf16.msra.mxu0 %v344
      %405 = vmatprep.subr.bf16.mxu0 0
      %406 = vmatpush1.bf16.msra.mxu0 %v399
      %407 = vmatprep.subr.bf16.mxu0 0
      %408 = vmatpush1.bf16.msra.mxu0 0
      %409 = vmatprep.subr.bf16.mxu0 0
      %410 = vmatpush1.bf16.msra.mxu0 0
      %411 = vmatprep.subr.bf16.mxu0 0
      %412 = vmatpush1.bf16.msra.mxu0 0
      %413 = vmatprep.subr.bf16.mxu0 0
      %414 = vmatpush1.bf16.msra.mxu0 0
      %415 = vmatprep.subr.bf16.mxu0 0
      %416 = vmatpush1.bf16.msra.mxu0 0
      %417 = vmatprep.subr.bf16.mxu0 0
      %418 = vmatpush1.bf16.msra.mxu0 0
      %419 = vmatprep.subr.bf16.mxu0 0
      %420 = vmatpush1.bf16.msra.mxu0 0
      %421 = vmatprep.subr.bf16.mxu0 0
      %422 = vmatpush1.bf16.msra.mxu0 0
      %423 = vmatprep.subr.bf16.mxu0 0
      %424 = vmatpush1.bf16.msra.mxu0 0
      %425 = vmatprep.subr.bf16.mxu0 0
      %426 = vmatpush1.bf16.msra.mxu0 0
      %427 = vmatprep.subr.bf16.mxu0 0
      %428 = vmatpush1.bf16.msra.mxu0 0
      %429 = vmatprep.subr.bf16.mxu0 0
      %430 = vmatpush1.bf16.msra.mxu0 0
      %431 = vmatprep.subr.bf16.mxu0 0
      %432 = vmatpush1.bf16.msra.mxu0 0
      %433 = vmatprep.mubr.bf16.mxu0 0
      %434 = vmatmul.mubr.bf16.gmra.mrb[0].mxu0 %v350
      %v435 = vpop.f32.mrb[0].mxu0
      %v436 = vadd.f32 0.0, %v435
      %v437 = vpop.f32.mrb[0].mxu0
      %v438 = vpop.f32.mrb[0].mxu0
      %v439 = vadd.f32 0.0, %v438
      %v440 = vpop.f32.mrb[0].mxu0
      %441 = vmatprep.mubr.bf16.mxu0 0
      %442 = vmatmul.mubr.bf16.gmra.mrb[0].mxu0 %v353
      %v443 = vpop.f32.mrb[0].mxu0
      %v444 = vadd.f32 0.0, %v443
      %v445 = vpop.f32.mrb[0].mxu0
      %v446 = vpop.f32.mrb[0].mxu0
      %v447 = vadd.f32 0.0, %v446
      %v448 = vpop.f32.mrb[0].mxu0
      %449 = vmatprep.mubr.bf16.mxu0 0
      %450 = vmatmul.mubr.bf16.gmra.mrb[0].mxu0 %v356
      %v451 = vpop.f32.mrb[0].mxu0
      %v452 = vadd.f32 0.0, %v451
      %v453 = vpop.f32.mrb[0].mxu0
      %v454 = vpop.f32.mrb[0].mxu0
      %v455 = vadd.f32 0.0, %v454
      %v456 = vpop.f32.mrb[0].mxu0
      %457 = vmatprep.mubr.bf16.mxu0 0
      %458 = vmatmul.mubr.bf16.gmra.mrb[0].mxu0 %v359
      %v459 = vpop.f32.mrb[0].mxu0
      %v460 = vadd.f32 0.0, %v459
      %v461 = vpop.f32.mrb[0].mxu0
      %v462 = vpop.f32.mrb[0].mxu0
      %v463 = vadd.f32 0.0, %v462
      %v464 = vpop.f32.mrb[0].mxu0
      %465 = vmatprep.mubr.bf16.mxu0 0
      %466 = vmatmul.mubr.bf16.gmra.mrb[0].mxu0 %v362
      %v467 = vpop.f32.mrb[0].mxu0
      %v468 = vadd.f32 0.0, %v467
      %v469 = vpop.f32.mrb[0].mxu0
      %v470 = vpop.f32.mrb[0].mxu0
      %v471 = vadd.f32 0.0, %v470
      %v472 = vpop.f32.mrb[0].mxu0
      %473 = vmatprep.mubr.bf16.mxu0 0
      %474 = vmatmul.mubr.bf16.gmra.mrb[0].mxu0 %v365
      %v475 = vpop.f32.mrb[0].mxu0
      %v476 = vadd.f32 0.0, %v475
      %v477 = vpop.f32.mrb[0].mxu0
      %v478 = vpop.f32.mrb[0].mxu0
      %v479 = vadd.f32 0.0, %v478
      %v480 = vpop.f32.mrb[0].mxu0
      %481 = vmatprep.mubr.bf16.mxu0 0
      %482 = vmatmul.mubr.bf16.gmra.mrb[0].mxu0 %v368
      %v483 = vpop.f32.mrb[0].mxu0
      %v484 = vadd.f32 0.0, %v483
      %v485 = vpop.f32.mrb[0].mxu0
      %v486 = vpop.f32.mrb[0].mxu0
      %v487 = vadd.f32 0.0, %v486
      %v488 = vpop.f32.mrb[0].mxu0
      %489 = vmatprep.mubr.bf16.mxu0 0
      %490 = vmatmul.mubr.bf16.gmra.mrb[0].mxu0 %v371
      %v491 = vpop.f32.mrb[0].mxu0
      %v492 = vadd.f32 0.0, %v491
      %v493 = vpop.f32.mrb[0].mxu0
      %v494 = vpop.f32.mrb[0].mxu0
      %v495 = vadd.f32 0.0, %v494
      %v496 = vpop.f32.mrb[0].mxu0
      %497 = vmatprep.mubr.bf16.mxu0 0
      %498 = vmatmul.mubr.bf16.gmra.mrb[0].mxu0 %v374
      %v499 = vpop.f32.mrb[0].mxu0
      %v500 = vadd.f32 0.0, %v499
      %v501 = vpop.f32.mrb[0].mxu0
      %v502 = vpop.f32.mrb[0].mxu0
      %v503 = vadd.f32 0.0, %v502
      %v504 = vpop.f32.mrb[0].mxu0
      %505 = vmatprep.mubr.bf16.mxu0 0
      %506 = vmatmul.mubr.bf16.gmra.mrb[0].mxu0 %v377
      %v507 = vpop.f32.mrb[0].mxu0
      %v508 = vadd.f32 0.0, %v507
      %v509 = vpop.f32.mrb[0].mxu0
      %v510 = vpop.f32.mrb[0].mxu0
      %v511 = vadd.f32 0.0, %v510
      %v512 = vpop.f32.mrb[0].mxu0
      %513 = vmatprep.mubr.bf16.mxu0 0
      %514 = vmatmul.mubr.bf16.gmra.mrb[0].mxu0 %v380
      %v515 = vpop.f32.mrb[0].mxu0
      %v516 = vadd.f32 0.0, %v515
      %v517 = vpop.f32.mrb[0].mxu0
      %v518 = vpop.f32.mrb[0].mxu0
      %v519 = vadd.f32 0.0, %v518
      %v520 = vpop.f32.mrb[0].mxu0
      %521 = vmatprep.mubr.bf16.mxu0 0
      %522 = vmatmul.mubr.bf16.gmra.mrb[0].mxu0 %v383
      %v523 = vpop.f32.mrb[0].mxu0
      %v524 = vadd.f32 0.0, %v523
      %v525 = vpop.f32.mrb[0].mxu0
      %v526 = vpop.f32.mrb[0].mxu0
      %v527 = vadd.f32 0.0, %v526
      %v528 = vpop.f32.mrb[0].mxu0
      %529 = vmatprep.mubr.bf16.mxu0 0
      %530 = vmatmul.mubr.bf16.gmra.mrb[0].mxu0 %v386
      %v531 = vpop.f32.mrb[0].mxu0
      %v532 = vadd.f32 0.0, %v531
      %v533 = vpop.f32.mrb[0].mxu0
      %v534 = vpop.f32.mrb[0].mxu0
      %v535 = vadd.f32 0.0, %v534
      %v536 = vpop.f32.mrb[0].mxu0
      %537 = vmatprep.mubr.bf16.mxu0 0
      %538 = vmatmul.mubr.bf16.gmra.mrb[0].mxu0 %v389
      %v539 = vpop.f32.mrb[0].mxu0
      %v540 = vadd.f32 0.0, %v539
      %v541 = vpop.f32.mrb[0].mxu0
      %v542 = vpop.f32.mrb[0].mxu0
      %v543 = vadd.f32 0.0, %v542
      %v544 = vpop.f32.mrb[0].mxu0
      %545 = vmatprep.mubr.bf16.mxu0 0
      %546 = vmatmul.mubr.bf16.gmra.mrb[0].mxu0 %v392
      %v547 = vpop.f32.mrb[0].mxu0
      %v548 = vadd.f32 0.0, %v547
      %v549 = vpop.f32.mrb[0].mxu0
      %v550 = vpop.f32.mrb[0].mxu0
      %v551 = vadd.f32 0.0, %v550
      %v552 = vpop.f32.mrb[0].mxu0
      %553 = vmatprep.mubr.bf16.mxu0 0
      %554 = vmatmul.mubr.bf16.gmra.mrb[0].mxu0 %v395
      %v555 = vpop.f32.mrb[0].mxu0
      %v556 = vadd.f32 0.0, %v555
      %v557 = vpop.f32.mrb[0].mxu0
      %v558 = vpop.f32.mrb[0].mxu0
      %v559 = vadd.f32 0.0, %v558
      %v560 = vpop.f32.mrb[0].mxu0
      %561 = vdwg.mxu0
      %v562 = vld [vmem:[%s200] sm:$0x1]
      %vm563 = vcmask 64512
      %v564 = vsel %vm563, %v436, 0.0
      %v565 = vsel %vm563, %v439, 0.0
      %v566 = vadd.f32 %v564, %v565
      %v567 = vsel %vm563, %v444, 0.0
      %v568 = vadd.f32 %v566, %v567
      %v569 = vsel %vm563, %v447, 0.0
      %v570 = vadd.f32 %v568, %v569
      %v571 = vsel %vm563, %v452, 0.0
      %v572 = vadd.f32 %v570, %v571
      %v573 = vsel %vm563, %v455, 0.0
      %v574 = vadd.f32 %v572, %v573
      %v575 = vsel %vm563, %v460, 0.0
      %v576 = vadd.f32 %v574, %v575
      %v577 = vsel %vm563, %v463, 0.0
      %v578 = vadd.f32 %v576, %v577
      %v579 = vsel %vm563, %v468, 0.0
      %v580 = vadd.f32 %v578, %v579
      %v581 = vsel %vm563, %v471, 0.0
      %v582 = vadd.f32 %v580, %v581
      %v583 = vsel %vm563, %v476, 0.0
      %v584 = vadd.f32 %v582, %v583
      %v585 = vsel %vm563, %v479, 0.0
      %v586 = vadd.f32 %v584, %v585
      %v587 = vsel %vm563, %v484, 0.0
      %v588 = vadd.f32 %v586, %v587
      %v589 = vsel %vm563, %v487, 0.0
      %v590 = vadd.f32 %v588, %v589
      %v591 = vsel %vm563, %v492, 0.0
      %v592 = vadd.f32 %v590, %v591
      %v593 = vsel %vm563, %v495, 0.0
      %v594 = vadd.f32 %v592, %v593
      %v595 = vsel %vm563, %v500, 0.0
      %v596 = vadd.f32 %v594, %v595
      %v597 = vsel %vm563, %v503, 0.0
      %v598 = vadd.f32 %v596, %v597
      %v599 = vsel %vm563, %v508, 0.0
      %v600 = vadd.f32 %v598, %v599
      %v601 = vsel %vm563, %v511, 0.0
      %v602 = vadd.f32 %v600, %v601
      %v603 = vsel %vm563, %v516, 0.0
      %v604 = vadd.f32 %v602, %v603
      %v605 = vsel %vm563, %v519, 0.0
      %v606 = vadd.f32 %v604, %v605
      %v607 = vsel %vm563, %v524, 0.0
      %v608 = vadd.f32 %v606, %v607
      %v609 = vsel %vm563, %v527, 0.0
      %v610 = vadd.f32 %v608, %v609
      %v611 = vsel %vm563, %v532, 0.0
      %v612 = vadd.f32 %v610, %v611
      %v613 = vsel %vm563, %v535, 0.0
      %v614 = vadd.f32 %v612, %v613
      %v615 = vsel %vm563, %v540, 0.0
      %v616 = vadd.f32 %v614, %v615
      %v617 = vsel %vm563, %v543, 0.0
      %v618 = vadd.f32 %v616, %v617
      %v619 = vsel %vm563, %v548, 0.0
      %v620 = vadd.f32 %v618, %v619
      %v621 = vsel %vm563, %v551, 0.0
      %v622 = vadd.f32 %v620, %v621
      %v623 = vsel %vm563, %v556, 0.0
      %v624 = vadd.f32 %v622, %v623
      %v625 = vsel %vm563, %v559, 0.0
      %v626 = vadd.f32 %v624, %v625
      %v627 = vrot.slane %v626, 4
      %v628 = vadd.f32 %v626, %v627
      %v629 = vrot.slane %v628, 2
      %v630 = vadd.f32 %v628, %v629
      %v631 = vrot.slane %v630, 1
      %v632 = vadd.f32 %v630, %v631
      %v633 = vadd.f32 %v562, %v632
      %vm634 = vcmask 57344
      %635 = vst.msk [vmem:[%s200] sm:$0x1] %vm634, %v633
      %v636 = vld [vmem:[%s200 + $0x1] sm:$0x1]
      %v637 = vmul.f32 %v436, %v436
      %v638 = vmul.f32 %v439, %v439
      %v639 = vmul.f32 %v444, %v444
      %v640 = vmul.f32 %v447, %v447
      %v641 = vmul.f32 %v452, %v452
      %v642 = vmul.f32 %v455, %v455
      %v643 = vmul.f32 %v460, %v460
      %v644 = vmul.f32 %v463, %v463
      %v645 = vmul.f32 %v468, %v468
      %v646 = vmul.f32 %v471, %v471
      %v647 = vmul.f32 %v476, %v476
      %v648 = vmul.f32 %v479, %v479
      %v649 = vmul.f32 %v484, %v484
      %v650 = vmul.f32 %v487, %v487
      %v651 = vmul.f32 %v492, %v492
      %v652 = vmul.f32 %v495, %v495
      %v653 = vmul.f32 %v500, %v500
      %v654 = vmul.f32 %v503, %v503
      %v655 = vmul.f32 %v508, %v508
      %v656 = vmul.f32 %v511, %v511
      %v657 = vmul.f32 %v516, %v516
      %v658 = vmul.f32 %v519, %v519
      %v659 = vmul.f32 %v524, %v524
      %v660 = vmul.f32 %v527, %v527
      %v661 = vmul.f32 %v532, %v532
      %v662 = vmul.f32 %v535, %v535
      %v663 = vmul.f32 %v540, %v540
      %v664 = vmul.f32 %v543, %v543
      %v665 = vmul.f32 %v548, %v548
      %v666 = vmul.f32 %v551, %v551
      %v667 = vmul.f32 %v556, %v556
      %v668 = vmul.f32 %v559, %v559
      %v669 = vsel %vm563, %v637, 0.0
      %v670 = vsel %vm563, %v638, 0.0
      %v671 = vadd.f32 %v669, %v670
      %v672 = vsel %vm563, %v639, 0.0
      %v673 = vadd.f32 %v671, %v672
      %v674 = vsel %vm563, %v640, 0.0
      %v675 = vadd.f32 %v673, %v674
      %v676 = vsel %vm563, %v641, 0.0
      %v677 = vadd.f32 %v675, %v676
      %v678 = vsel %vm563, %v642, 0.0
      %v679 = vadd.f32 %v677, %v678
      %v680 = vsel %vm563, %v643, 0.0
      %v681 = vadd.f32 %v679, %v680
      %v682 = vsel %vm563, %v644, 0.0
      %v683 = vadd.f32 %v681, %v682
      %v684 = vsel %vm563, %v645, 0.0
      %v685 = vadd.f32 %v683, %v684
      %v686 = vsel %vm563, %v646, 0.0
      %v687 = vadd.f32 %v685, %v686
      %v688 = vsel %vm563, %v647, 0.0
      %v689 = vadd.f32 %v687, %v688
      %v690 = vsel %vm563, %v648, 0.0
      %v691 = vadd.f32 %v689, %v690
      %v692 = vsel %vm563, %v649, 0.0
      %v693 = vadd.f32 %v691, %v692
      %v694 = vsel %vm563, %v650, 0.0
      %v695 = vadd.f32 %v693, %v694
      %v696 = vsel %vm563, %v651, 0.0
      %v697 = vadd.f32 %v695, %v696
      %v698 = vsel %vm563, %v652, 0.0
      %v699 = vadd.f32 %v697, %v698
      %v700 = vsel %vm563, %v653, 0.0
      %v701 = vadd.f32 %v699, %v700
      %v702 = vsel %vm563, %v654, 0.0
      %v703 = vadd.f32 %v701, %v702
      %v704 = vsel %vm563, %v655, 0.0
      %v705 = vadd.f32 %v703, %v704
      %v706 = vsel %vm563, %v656, 0.0
      %v707 = vadd.f32 %v705, %v706
      %v708 = vsel %vm563, %v657, 0.0
      %v709 = vadd.f32 %v707, %v708
      %v710 = vsel %vm563, %v658, 0.0
      %v711 = vadd.f32 %v709, %v710
      %v712 = vsel %vm563, %v659, 0.0
      %v713 = vadd.f32 %v711, %v712
      %v714 = vsel %vm563, %v660, 0.0
      %v715 = vadd.f32 %v713, %v714
      %v716 = vsel %vm563, %v661, 0.0
      %v717 = vadd.f32 %v715, %v716
      %v718 = vsel %vm563, %v662, 0.0
      %v719 = vadd.f32 %v717, %v718
      %v720 = vsel %vm563, %v663, 0.0
      %v721 = vadd.f32 %v719, %v720
      %v722 = vsel %vm563, %v664, 0.0
      %v723 = vadd.f32 %v721, %v722
      %v724 = vsel %vm563, %v665, 0.0
      %v725 = vadd.f32 %v723, %v724
      %v726 = vsel %vm563, %v666, 0.0
      %v727 = vadd.f32 %v725, %v726
      %v728 = vsel %vm563, %v667, 0.0
      %v729 = vadd.f32 %v727, %v728
      %v730 = vsel %vm563, %v668, 0.0
      %v731 = vadd.f32 %v729, %v730
      %v732 = vrot.slane %v731, 4
      %v733 = vadd.f32 %v731, %v732
      %v734 = vrot.slane %v733, 2
      %v735 = vadd.f32 %v733, %v734
      %v736 = vrot.slane %v735, 1
      %v737 = vadd.f32 %v735, %v736
      %v738 = vadd.f32 %v636, %v737
      %739 = vst.msk [vmem:[%s200 + $0x1] sm:$0x1] %vm634, %v738
      %740 = vst.msk [vmem:[%s206] sm:$0xff] %vm563, %v436
      %741 = vst.msk [vmem:[%s206 + $0x8] sm:$0xff] %vm563, %v439
      %742 = vst.msk [vmem:[%s206 + $0x10] sm:$0xff] %vm563, %v444
      %743 = vst.msk [vmem:[%s206 + $0x18] sm:$0xff] %vm563, %v447
      %744 = vst.msk [vmem:[%s206 + $0x20] sm:$0xff] %vm563, %v452
      %745 = vst.msk [vmem:[%s206 + $0x28] sm:$0xff] %vm563, %v455
      %746 = vst.msk [vmem:[%s206 + $0x30] sm:$0xff] %vm563, %v460
      %747 = vst.msk [vmem:[%s206 + $0x38] sm:$0xff] %vm563, %v463
      %748 = vst.msk [vmem:[%s206 + $0x40] sm:$0xff] %vm563, %v468
      %749 = vst.msk [vmem:[%s206 + $0x48] sm:$0xff] %vm563, %v471
      %750 = vst.msk [vmem:[%s206 + $0x50] sm:$0xff] %vm563, %v476
      %751 = vst.msk [vmem:[%s206 + $0x58] sm:$0xff] %vm563, %v479
      %752 = vst.msk [vmem:[%s206 + $0x60] sm:$0xff] %vm563, %v484
      %753 = vst.msk [vmem:[%s206 + $0x68] sm:$0xff] %vm563, %v487
      %754 = vst.msk [vmem:[%s206 + $0x70] sm:$0xff] %vm563, %v492
      %755 = vst.msk [vmem:[%s206 + $0x78] sm:$0xff] %vm563, %v495
      %756 = vst.msk [vmem:[%s206 + $0x80] sm:$0xff] %vm563, %v500
      %757 = vst.msk [vmem:[%s206 + $0x88] sm:$0xff] %vm563, %v503
      %758 = vst.msk [vmem:[%s206 + $0x90] sm:$0xff] %vm563, %v508
      %759 = vst.msk [vmem:[%s206 + $0x98] sm:$0xff] %vm563, %v511
      %760 = vst.msk [vmem:[%s206 + $0xa0] sm:$0xff] %vm563, %v516
      %761 = vst.msk [vmem:[%s206 + $0xa8] sm:$0xff] %vm563, %v519
      %762 = vst.msk [vmem:[%s206 + $0xb0] sm:$0xff] %vm563, %v524
      %763 = vst.msk [vmem:[%s206 + $0xb8] sm:$0xff] %vm563, %v527
      %764 = vst.msk [vmem:[%s206 + $0xc0] sm:$0xff] %vm563, %v532
      %765 = vst.msk [vmem:[%s206 + $0xc8] sm:$0xff] %vm563, %v535
      %766 = vst.msk [vmem:[%s206 + $0xd0] sm:$0xff] %vm563, %v540
      %767 = vst.msk [vmem:[%s206 + $0xd8] sm:$0xff] %vm563, %v543
      %768 = vst.msk [vmem:[%s206 + $0xe0] sm:$0xff] %vm563, %v548
      %769 = vst.msk [vmem:[%s206 + $0xe8] sm:$0xff] %vm563, %v551
      %770 = vst.msk [vmem:[%s206 + $0xf0] sm:$0xff] %vm563, %v556
      %771 = vst.msk [vmem:[%s206 + $0xf8] sm:$0xff] %vm563, %v559
      %p772 = scmp.lt.s32.totalorder %s19, 1
      %s773 = scalar_select %p772, %s19, 1
      %s774 = smul.addr %s773, 8
      %s775 = scalar_lea.vmem %s2, %s774
      %s776 = sadd.s32 %s19, %s20
      %s777 = smul.u32 32, %s776
      %p778 = scmp.lt.s32.totalorder %s777, 63
      %s779 = scalar_select %p778, %s777, 63
      %s780 = smul.addr %s779, 8
      %s781 = scalar_lea.vmem %s3, %s780
      // Predicated region
      $region33: #{cnn_block.2} parent=27 // pred_check
        %p782 = pneg %p94
      $region34: #{cnn_block.2} parent=27 // pred_check_branch
        %784 = sbr.rel (%p782) target = $region36
      $region35: #{cnn_block.2} parent=27 // pred_region
        _
      $region36: #{cnn_block.2} parent=27 // pred_fallthru
        _
      // Predicated region
      $region37: #{cnn_block.2} parent=27 // pred_check
        %p785 = pneg %p122
      $region38: #{cnn_block.2} parent=27 // pred_check_branch
        %787 = sbr.rel (%p785) target = $region40
      $region39: #{cnn_block.2} parent=27 // pred_region
        %s788 = sadd.s32 %s19, %s20
        %s789 = smul.u32 32, %s788
      $region40: #{cnn_block.2} parent=27 // pred_fallthru
        _
    $region28: #{cnn_block.2} parent=5 // pred_fallthru
      _
    %p790 = scmp.le.s32.totalorder 2, %s10
    // Predicated region
    $region41: #{cnn_block.2} parent=5 // pred_check
      %p791 = pneg %p790
    $region42: #{cnn_block.2} parent=5 // pred_check_branch
      %793 = sbr.rel (%p791) target = $region44
    $region43: #{cnn_block.2} parent=5 // pred_region
      %s794 = ssub.s32 %s10, 2
      // Predicated region
      $region45: #{cnn_block.2} parent=43 // pred_check
        %p795 = pneg %p100
      $region46: #{cnn_block.2} parent=43 // pred_check_branch
        %797 = sbr.rel (%p795) target = $region48
      $region47: #{cnn_block.2} parent=43 // pred_region
        %p798 = scmp.lt.s32.totalorder %s21, 1
        %s799 = scalar_select %p798, %s21, 1
        %s800 = smul.addr %s799, 8
        %s801 = scalar_lea.vmem %s2, %s800
      $region48: #{cnn_block.2} parent=43 // pred_fallthru
        _
      // Predicated region
      $region49: #{cnn_block.2} parent=43 // pred_check
        %p802 = pneg %p128
      $region50: #{cnn_block.2} parent=43 // pred_check_branch
        %804 = sbr.rel (%p802) target = $region52
      $region51: #{cnn_block.2} parent=43 // pred_region
        %s805 = sadd.s32 %s21, %s22
        %s806 = smul.u32 32, %s805
        %p807 = scmp.lt.s32.totalorder %s806, 63
        %s808 = scalar_select %p807, %s806, 63
        %s809 = smul.addr %s808, 8
        %s810 = scalar_lea.vmem %s3, %s809
      $region52: #{cnn_block.2} parent=43 // pred_fallthru
        _
    $region44: #{cnn_block.2} parent=5 // pred_fallthru
      _
  $region6: #{cnn_block.2} parent=0 // loop_footer
    %s14 = sadd.s32 1, %s10
  $region7: #{cnn_block.2} parent=0 // loop_footer_branch
    %9 = sbr.rel target = $region3
  $region8: #{cnn_block.2} parent=0 // loop_exit
    _

</llo_original>
